<compile_context>
chip_gen: v6e
topology: v6e:2x2x1
jax: 0.10.0
libtpu: 0.0.40
codegen_flags: <defaults>
</compile_context>

<pallas_src>
import math
import numpy as np
import jax
import jax.numpy as jnp
from jax.experimental import pallas as pl
from jax.experimental.pallas import tpu as pltpu

NEG_SLOPE = 0.01            # nn.LeakyReLU default
BN_EPS = 1e-5               # nn.BatchNorm2d default eps
VMEM_LIMIT = 32 * 1024 * 1024


# ----------------------------------------------------------------------------
# In-kernel helpers (f32 elementwise, bf16 MXU matmuls)
# ----------------------------------------------------------------------------
def _leaky(y):
    return jnp.where(y >= 0, y, y * NEG_SLOPE)


def _bn_rows(y):
    # BatchNorm2d(track_running_stats=False), affine at init (weight=1, bias=0):
    # batch stats over all (batch, spatial) positions == rows; biased variance.
    mean = jnp.mean(y, axis=0, keepdims=True)
    var = jnp.mean(jnp.square(y - mean), axis=0, keepdims=True)
    return (y - mean) * jax.lax.rsqrt(var + BN_EPS)


def _mm(a, b):
    # bf16 x bf16 -> f32 on the MXU (perf feedback: no Precision.HIGHEST).
    return jnp.dot(a.astype(jnp.bfloat16), b.astype(jnp.bfloat16),
                   preferred_element_type=jnp.float32)


# ----------------------------------------------------------------------------
# Fused kernels
# ----------------------------------------------------------------------------
def _make_stem_kernel(norm):
    """conv1 (1 x model_width) + BN + LReLU + conv2 (1x1) + BN + LReLU."""
    def kernel(x_ref, w1_ref, w2_ref, o_ref):
        h = _mm(x_ref[...], w1_ref[...])
        if norm:
            h = _bn_rows(h)
        h = _leaky(h)
        h = _mm(h, w2_ref[...])
        if norm:
            h = _bn_rows(h)
        h = _leaky(h)
        o_ref[...] = h.astype(o_ref.dtype)
    return kernel


def _make_down_kernel(cout, norm, head):
    """Block(size_reduction=1): (2,1)/stride-2 conv_a and shortcut conv share one
    2*cout-wide RHS, then 1x1 conv_b, then shortcut add.  Optionally fuses the
    fc1 + LReLU + fc2 head (last block only)."""
    def kernel(*refs):
        h_ref, st_ref, sb_ref, wt_ref, wb_ref, wpw_ref = refs[:6]
        o_ref = refs[-1]
        h = h_ref[...]
        # Row pairing (even / odd rows of each image) done on the MXU with tiny
        # constant 0/1 selection matrices -> `h` is read from HBM exactly once.
        top = _mm(st_ref[...], h)                              # (Rh, Cin)
        bot = _mm(sb_ref[...], h)                              # (Rh, Cin)
        yc = _mm(top, wt_ref[...]) + _mm(bot, wb_ref[...])     # (Rh, 2*cout) = [conv_a | shortcut]
        if norm:                                               # same BN flag for both paths
            yc = _bn_rows(yc)
        yc = _leaky(yc)
        y = yc[:, :cout]
        sc = yc[:, cout:]
        z = _mm(y, wpw_ref[...])                               # 1x1 conv_b
        if norm:
            z = _bn_rows(z)
        z = _leaky(z)
        out = sc + z
        if head:                                               # fc1 -> LReLU -> fc2
            f1w_ref, f1b_ref, f2w_ref, f2b_ref = refs[6:10]
            f = _leaky(_mm(out, f1w_ref[...]) + f1b_ref[...])
            out = _mm(f, f2w_ref[...]) + f2b_ref[...]
        o_ref[...] = out.astype(o_ref.dtype)
    return kernel


def _make_same_kernel(norm1, norm2):
    """Block(size_reduction=0): reflect-pad bottom + (2,1) conv + 1x1 conv + identity add.
    The 'next row (reflected at the bottom)' is built in-kernel via a constant 0/1
    mixing matrix on the MXU."""
    def kernel(h_ref, d_ref, wt_ref, wb_ref, wpw_ref, o_ref):
        h = h_ref[...]
        nxt = _mm(d_ref[...], h)                               # row t -> row t+1 (reflect last)
        y = _mm(h, wt_ref[...]) + _mm(nxt, wb_ref[...])
        if norm1:
            y = _bn_rows(y)
        y = _leaky(y)
        z = _mm(y, wpw_ref[...])
        if norm2:
            z = _bn_rows(z)
        z = _leaky(z)
        o_ref[...] = (h + z).astype(o_ref.dtype)
    return kernel


def _fused_call(kernel, inputs, out_rows, out_cols):
    # Whole-array-in-VMEM design: guard the working set against the scoped VMEM limit.
    nbytes = sum(int(np.prod(a.shape)) * a.dtype.itemsize for a in inputs)
    nbytes += out_rows * out_cols * 4
    # TODO(synk): for large B*N switch to a row-tiled grid (parallel rows, two-pass BN).
    assert 4 * nbytes < VMEM_LIMIT, "fused-kernel working set exceeds VMEM budget"
    vmem = pl.BlockSpec(memory_space=pltpu.MemorySpace.VMEM)
    return pl.pallas_call(
        kernel,
        out_shape=jax.ShapeDtypeStruct((out_rows, out_cols), jnp.float32),
        in_specs=[vmem] * len(inputs),
        out_specs=vmem,
        compiler_params=pltpu.CompilerParams(vmem_limit_bytes=VMEM_LIMIT),
    )(*inputs)


# ----------------------------------------------------------------------------
# Weight prep (done ONCE, outside the forward)
# ----------------------------------------------------------------------------
def w_1xW_to_mat(w):         # (cout, cin, 1, kw) -> (cin*kw, cout), feature order (c, w)
    cout, cin, _, kw = w.shape
    return w.reshape(cout, cin * kw).T


def w_1x1_to_mat(w):         # (cout, cin, 1, 1) -> (cin, cout)
    return w[:, :, 0, 0].T


def w_2x1_split(w):          # (cout, cin, 2, 1) -> W_top (cin, cout), W_bot (cin, cout)
    return w[:, :, 0, 0].T, w[:, :, 1, 0].T


def _pair_select(B, H):      # even/odd row selectors for stride-2 pairing, batch-aware
    R, Rh = B * H, B * (H // 2)
    E = np.zeros((Rh, R), np.float32)
    O = np.zeros((Rh, R), np.float32)
    for b in range(B):
        for t in range(H // 2):
            E[b * (H // 2) + t, b * H + 2 * t] = 1.0
            O[b * (H // 2) + t, b * H + 2 * t + 1] = 1.0
    return E, O


def _next_row_reflect(B, H):  # row t -> row t+1; last row of each image -> row H-2 (reflect pad)
    R = B * H
    D = np.zeros((R, R), np.float32)
    for b in range(B):
        for t in range(H - 1):
            D[b * H + t, b * H + t + 1] = 1.0
        D[b * H + H - 1, b * H + H - 2] = 1.0
    return D


def build_plan(params, N, model_width, B):
    bf = lambda a: jnp.asarray(a, jnp.bfloat16)
    f32 = lambda a: jnp.asarray(a, jnp.float32)

    plan = {
        "N": N, "model_width": model_width,
        "stem": {"w1": bf(w_1xW_to_mat(params["conv1"])),
                 "w2": bf(w_1x1_to_mat(params["conv2"])),
                 "norm": N > 1, "cout": 32},
        "steps": [],
    }
    fc = {"w1": bf(params["fc1_w"].T), "b1": f32(params["fc1_b"].reshape(1, -1)),
          "w2": bf(params["fc2_w"].T), "b2": f32(params["fc2_b"].reshape(1, -1))}

    n_steps = len(params["blocks"])
    assert params["blocks"][-1]["type"] == 1  # network always ends with a down-block
    for idx, blk in enumerate(params["blocks"]):
        H = blk["height"]
        if blk["type"] == 1:
            cout = blk["wa"].shape[0]
            wa_t, wa_b = w_2x1_split(blk["wa"])
            ws_t, ws_b = w_2x1_split(blk["ws"])
            E, O = _pair_select(B, H)
            step = {"kind": "down", "cout": cout, "rows_out": B * (H // 2),
                    "norm": H > 2,
                    "sel_top": bf(E), "sel_bot": bf(O),
                    "w_top": bf(jnp.concatenate([wa_t, ws_t], axis=1)),  # [conv_a | shortcut]
                    "w_bot": bf(jnp.concatenate([wa_b, ws_b], axis=1)),
                    "w_pw": bf(w_1x1_to_mat(blk["wb"])),
                    "head": idx == n_steps - 1}
            if step["head"]:
                step["fc"] = fc
        else:
            cout = blk["wa"].shape[0]
            wa_t, wa_b = w_2x1_split(blk["wa"])
            step = {"kind": "same", "cout": cout, "rows_out": B * H,
                    "norm1": H > 2, "norm2": H > 1,
                    "mix_next": bf(_next_row_reflect(B, H)),
                    "w_top": bf(wa_t), "w_bot": bf(wa_b),
                    "w_pw": bf(w_1x1_to_mat(blk["wb"]))}
        plan["steps"].append(step)
    return plan


# ----------------------------------------------------------------------------
# Parameter init (deterministic, synthetic)
# ----------------------------------------------------------------------------
def init_params(key, N, model_width):
    n_blocks = int(math.log2(N))
    keys = iter(jax.random.split(key, 64))

    def w(shape):
        return jax.random.normal(next(keys), shape, jnp.float32) * 0.1

    params = {"conv1": w((32, 2, 1, model_width)), "conv2": w((32, 32, 1, 1))}
    blocks = []
    height = N
    prev = 32
    for block_no in range(n_blocks):
        if (block_no + 2) % 2 < 1:
            cin, cout = prev, prev
        else:
            cin, cout = prev, prev * 2
            prev = prev * 2
        blocks.append({"type": 1, "height": height,
                       "wa": w((cout, cin, 2, 1)),
                       "wb": w((cout, cout, 1, 1)),
                       "ws": w((cout, cin, 2, 1))})
        height = height // 2
        if block_no < n_blocks - 1:
            blocks.append({"type": 0, "height": height,
                           "wa": w((cout, cout, 2, 1)),
                           "wb": w((cout, cout, 1, 1))})
    params["blocks"] = blocks
    fc_size = prev
    params["fc_size"] = fc_size
    params["fc1_w"] = w((fc_size // 4, fc_size))
    params["fc1_b"] = w((fc_size // 4,))
    params["fc2_w"] = w((1, fc_size // 4))
    params["fc2_b"] = w((1,))
    return params


# ----------------------------------------------------------------------------
# Forward (6 fused Pallas kernels)
# ----------------------------------------------------------------------------
def cnn_residual_forward(plan, x):
    B, _, N, mw = x.shape
    # NCHW -> (B*N, 2*model_width) rows, feature order (c, w) to match OIHW flattening
    xr = jnp.transpose(x, (0, 2, 1, 3)).reshape(B * N, 2 * mw)

    stem = plan["stem"]
    h = _fused_call(_make_stem_kernel(stem["norm"]),
                    [xr, stem["w1"], stem["w2"]], B * N, stem["cout"])

    for step in plan["steps"]:
        if step["kind"] == "down":
            inputs = [h, step["sel_top"], step["sel_bot"],
                      step["w_top"], step["w_bot"], step["w_pw"]]
            out_cols = step["cout"]
            if step["head"]:
                fc = step["fc"]
                inputs += [fc["w1"], fc["b1"], fc["w2"], fc["b2"]]
                out_cols = 1
            h = _fused_call(_make_down_kernel(step["cout"], step["norm"], step["head"]),
                            inputs, step["rows_out"], out_cols)
        else:
            inputs = [h, step["mix_next"], step["w_top"], step["w_bot"], step["w_pw"]]
            h = _fused_call(_make_same_kernel(step["norm1"], step["norm2"]),
                            inputs, step["rows_out"], step["cout"])
    return h  # (B, 1)


# ----------------------------------------------------------------------------
# Pure-JAX reference (lax.conv, exact f32) for verification
# ----------------------------------------------------------------------------
def _ref_conv_n_rel(x, w, stride, apply_norm):
    y = jax.lax.conv_general_dilated(x, w, window_strides=stride, padding="VALID",
                                     dimension_numbers=("NCHW", "OIHW", "NCHW"),
                                     precision=jax.lax.Precision.HIGHEST)
    if apply_norm:
        mean = jnp.mean(y, axis=(0, 2, 3), keepdims=True)
        var = jnp.mean(jnp.square(y - mean), axis=(0, 2, 3), keepdims=True)
        y = (y - mean) * jax.lax.rsqrt(var + BN_EPS)
    return jnp.where(y >= 0, y, NEG_SLOPE * y)


def ref_forward(params, x, N, model_width):
    h = _ref_conv_n_rel(x, params["conv1"], (1, 1), N > 1)
    h = _ref_conv_n_rel(h, params["conv2"], (1, 1), N > 1)
    for blk in params["blocks"]:
        H = blk["height"]
        if blk["type"] == 1:
            sc = _ref_conv_n_rel(h, blk["ws"], (2, 1), H > 2)
            y = _ref_conv_n_rel(h, blk["wa"], (2, 1), H > 2)
            y = _ref_conv_n_rel(y, blk["wb"], (1, 1), (H // 2) > 1)
            h = sc + y
        else:
            hp = jnp.concatenate([h, h[:, :, H - 2:H - 1, :]], axis=2)  # reflect pad bottom
            y = _ref_conv_n_rel(hp, blk["wa"], (1, 1), H > 2)
            y = _ref_conv_n_rel(y, blk["wb"], (1, 1), H > 1)
            h = h + y
    B = x.shape[0]
    h = h.reshape(B, -1)
    h = h @ params["fc1_w"].T + params["fc1_b"]
    h = jnp.where(h >= 0, h, NEG_SLOPE * h)
    h = h @ params["fc2_w"].T + params["fc2_b"]
    return h


# ----------------------------------------------------------------------------
if __name__ == "__main__":
    N = 8            # spatial height (power of two), n_blocks = 3
    MODEL_WIDTH = 4  # spatial width consumed by the first conv
    B = 2

    key = jax.random.PRNGKey(0)
    k_x, k_p = jax.random.split(key)
    x = jax.random.normal(k_x, (B, 2, N, MODEL_WIDTH), jnp.float32)
    params = init_params(k_p, N, MODEL_WIDTH)
    plan = build_plan(params, N, MODEL_WIDTH, B)

    fwd = jax.jit(lambda xx: cnn_residual_forward(plan, xx))
    out = jax.block_until_ready(fwd(x))

    ref = jax.block_until_ready(ref_forward(params, x, N, MODEL_WIDTH))
    assert out.shape == (B, 1), out.shape
    # Kernel matmuls run bf16-on-MXU (per perf feedback); reference is exact f32.
    assert jnp.allclose(out, ref, atol=5e-2, rtol=5e-2), (out, ref)

    print("KERNEL_OK")
</pallas_src>

<mosaic_0001>
module attributes {stable_mosaic.version = 11 : i64} {
  func.func @kernel(%arg0: memref<16x8xf32, #tpu.memory_space<vmem>>, %arg1: memref<8x32xbf16, #tpu.memory_space<vmem>>, %arg2: memref<32x32xbf16, #tpu.memory_space<vmem>>, %arg3: memref<16x32xf32, #tpu.memory_space<vmem>>) attributes {dimension_semantics = [], scalar_prefetch = 0 : i64, scratch_operands = 0 : i64, tpu.core_type = #tpu.core_type<tc>} {
    %c0 = arith.constant 0 : index
    %c0_0 = arith.constant 0 : index
    %0 = vector.load %arg0[%c0, %c0_0] : memref<16x8xf32, #tpu.memory_space<vmem>>, vector<16x8xf32>
    %c0_1 = arith.constant 0 : index
    %c0_2 = arith.constant 0 : index
    %1 = vector.load %arg1[%c0_1, %c0_2] : memref<8x32xbf16, #tpu.memory_space<vmem>>, vector<8x32xbf16>
    %2 = arith.truncf %0 : vector<16x8xf32> to vector<16x8xbf16>
    %cst = arith.constant dense<0.000000e+00> : vector<16x32xf32>
    %3 = tpu.matmul %2, %1, %cst {dimension_numbers = #tpu.dot_dimension_numbers<[1], [0], [0], [1], [0, 0, 1, 1], [], []>} : vector<16x8xbf16>, vector<8x32xbf16>, vector<16x32xf32> -> vector<16x32xf32>
    %cst_3 = arith.constant dense<0.000000e+00> : vector<32xf32>
    %4 = vector.multi_reduction <add>, %3, %cst_3 [0] : vector<16x32xf32> to vector<32xf32>
    %5 = vector.shape_cast %4 : vector<32xf32> to vector<1x32xf32>
    %cst_4 = arith.constant 1.600000e+01 : f32
    %6 = vector.broadcast %cst_4 : f32 to vector<1x32xf32>
    %7 = arith.divf %5, %6 : vector<1x32xf32>
    %8 = vector.broadcast %7 : vector<1x32xf32> to vector<16x32xf32>
    %9 = arith.subf %3, %8 : vector<16x32xf32>
    %10 = arith.mulf %9, %9 : vector<16x32xf32>
    %cst_5 = arith.constant dense<0.000000e+00> : vector<32xf32>
    %11 = vector.multi_reduction <add>, %10, %cst_5 [0] : vector<16x32xf32> to vector<32xf32>
    %12 = vector.shape_cast %11 : vector<32xf32> to vector<1x32xf32>
    %cst_6 = arith.constant 1.600000e+01 : f32
    %13 = vector.broadcast %cst_6 : f32 to vector<1x32xf32>
    %14 = arith.divf %12, %13 : vector<1x32xf32>
    %15 = vector.broadcast %7 : vector<1x32xf32> to vector<16x32xf32>
    %16 = arith.subf %3, %15 : vector<16x32xf32>
    %cst_7 = arith.constant 9.99999974E-6 : f32
    %17 = vector.broadcast %cst_7 : f32 to vector<1x32xf32>
    %18 = arith.addf %14, %17 : vector<1x32xf32>
    %19 = math.rsqrt %18 : vector<1x32xf32>
    %20 = vector.broadcast %19 : vector<1x32xf32> to vector<16x32xf32>
    %21 = arith.mulf %16, %20 : vector<16x32xf32>
    %cst_8 = arith.constant 0.000000e+00 : f32
    %22 = vector.broadcast %cst_8 : f32 to vector<16x32xf32>
    %23 = arith.cmpf oge, %21, %22 : vector<16x32xf32>
    %cst_9 = arith.constant 0.00999999977 : f32
    %24 = vector.broadcast %cst_9 : f32 to vector<16x32xf32>
    %25 = arith.mulf %21, %24 : vector<16x32xf32>
    %26 = arith.select %23, %21, %25 : vector<16x32xi1>, vector<16x32xf32>
    %c0_10 = arith.constant 0 : index
    %c0_11 = arith.constant 0 : index
    %27 = vector.load %arg2[%c0_10, %c0_11] : memref<32x32xbf16, #tpu.memory_space<vmem>>, vector<32x32xbf16>
    %28 = arith.truncf %26 : vector<16x32xf32> to vector<16x32xbf16>
    %cst_12 = arith.constant dense<0.000000e+00> : vector<16x32xf32>
    %29 = tpu.matmul %28, %27, %cst_12 {dimension_numbers = #tpu.dot_dimension_numbers<[1], [0], [0], [1], [0, 0, 1, 1], [], []>} : vector<16x32xbf16>, vector<32x32xbf16>, vector<16x32xf32> -> vector<16x32xf32>
    %cst_13 = arith.constant dense<0.000000e+00> : vector<32xf32>
    %30 = vector.multi_reduction <add>, %29, %cst_13 [0] : vector<16x32xf32> to vector<32xf32>
    %31 = vector.shape_cast %30 : vector<32xf32> to vector<1x32xf32>
    %cst_14 = arith.constant 1.600000e+01 : f32
    %32 = vector.broadcast %cst_14 : f32 to vector<1x32xf32>
    %33 = arith.divf %31, %32 : vector<1x32xf32>
    %34 = vector.broadcast %33 : vector<1x32xf32> to vector<16x32xf32>
    %35 = arith.subf %29, %34 : vector<16x32xf32>
    %36 = arith.mulf %35, %35 : vector<16x32xf32>
    %cst_15 = arith.constant dense<0.000000e+00> : vector<32xf32>
    %37 = vector.multi_reduction <add>, %36, %cst_15 [0] : vector<16x32xf32> to vector<32xf32>
    %38 = vector.shape_cast %37 : vector<32xf32> to vector<1x32xf32>
    %cst_16 = arith.constant 1.600000e+01 : f32
    %39 = vector.broadcast %cst_16 : f32 to vector<1x32xf32>
    %40 = arith.divf %38, %39 : vector<1x32xf32>
    %41 = vector.broadcast %33 : vector<1x32xf32> to vector<16x32xf32>
    %42 = arith.subf %29, %41 : vector<16x32xf32>
    %cst_17 = arith.constant 9.99999974E-6 : f32
    %43 = vector.broadcast %cst_17 : f32 to vector<1x32xf32>
    %44 = arith.addf %40, %43 : vector<1x32xf32>
    %45 = math.rsqrt %44 : vector<1x32xf32>
    %46 = vector.broadcast %45 : vector<1x32xf32> to vector<16x32xf32>
    %47 = arith.mulf %42, %46 : vector<16x32xf32>
    %cst_18 = arith.constant 0.000000e+00 : f32
    %48 = vector.broadcast %cst_18 : f32 to vector<16x32xf32>
    %49 = arith.cmpf oge, %47, %48 : vector<16x32xf32>
    %cst_19 = arith.constant 0.00999999977 : f32
    %50 = vector.broadcast %cst_19 : f32 to vector<16x32xf32>
    %51 = arith.mulf %47, %50 : vector<16x32xf32>
    %52 = arith.select %49, %47, %51 : vector<16x32xi1>, vector<16x32xf32>
    %c0_20 = arith.constant 0 : index
    %c0_21 = arith.constant 0 : index
    %53 = vector.load %arg3[%c0_20, %c0_21] : memref<16x32xf32, #tpu.memory_space<vmem>>, vector<16x32xf32>
    tpu.vector_store %arg3[%c0_20, %c0_21], %52 {strides = array<i32>} : memref<16x32xf32, #tpu.memory_space<vmem>>, vector<16x32xf32>,
    return
  }
}

module attributes {stable_mosaic.version = 11 : i64} {
  func.func @kernel(%arg0: memref<8x32xf32, #tpu.memory_space<vmem>>, %arg1: memref<8x8xbf16, #tpu.memory_space<vmem>>, %arg2: memref<32x32xbf16, #tpu.memory_space<vmem>>, %arg3: memref<32x32xbf16, #tpu.memory_space<vmem>>, %arg4: memref<32x32xbf16, #tpu.memory_space<vmem>>, %arg5: memref<8x32xf32, #tpu.memory_space<vmem>>) attributes {dimension_semantics = [], scalar_prefetch = 0 : i64, scratch_operands = 0 : i64, tpu.core_type = #tpu.core_type<tc>} {
    %c0 = arith.constant 0 : index
    %c0_0 = arith.constant 0 : index
    %0 = vector.load %arg0[%c0, %c0_0] : memref<8x32xf32, #tpu.memory_space<vmem>>, vector<8x32xf32>
    %c0_1 = arith.constant 0 : index
    %c0_2 = arith.constant 0 : index
    %1 = vector.load %arg1[%c0_1, %c0_2] : memref<8x8xbf16, #tpu.memory_space<vmem>>, vector<8x8xbf16>
    %2 = arith.truncf %0 : vector<8x32xf32> to vector<8x32xbf16>
    %cst = arith.constant dense<0.000000e+00> : vector<8x32xf32>
    %3 = tpu.matmul %1, %2, %cst {dimension_numbers = #tpu.dot_dimension_numbers<[1], [0], [0], [1], [0, 0, 1, 1], [], []>} : vector<8x8xbf16>, vector<8x32xbf16>, vector<8x32xf32> -> vector<8x32xf32>
    %c0_3 = arith.constant 0 : index
    %c0_4 = arith.constant 0 : index
    %4 = vector.load %arg2[%c0_3, %c0_4] : memref<32x32xbf16, #tpu.memory_space<vmem>>, vector<32x32xbf16>
    %5 = arith.truncf %0 : vector<8x32xf32> to vector<8x32xbf16>
    %cst_5 = arith.constant dense<0.000000e+00> : vector<8x32xf32>
    %6 = tpu.matmul %5, %4, %cst_5 {dimension_numbers = #tpu.dot_dimension_numbers<[1], [0], [0], [1], [0, 0, 1, 1], [], []>} : vector<8x32xbf16>, vector<32x32xbf16>, vector<8x32xf32> -> vector<8x32xf32>
    %c0_6 = arith.constant 0 : index
    %c0_7 = arith.constant 0 : index
    %7 = vector.load %arg3[%c0_6, %c0_7] : memref<32x32xbf16, #tpu.memory_space<vmem>>, vector<32x32xbf16>
    %8 = arith.truncf %3 : vector<8x32xf32> to vector<8x32xbf16>
    %cst_8 = arith.constant dense<0.000000e+00> : vector<8x32xf32>
    %9 = tpu.matmul %8, %7, %cst_8 {dimension_numbers = #tpu.dot_dimension_numbers<[1], [0], [0], [1], [0, 0, 1, 1], [], []>} : vector<8x32xbf16>, vector<32x32xbf16>, vector<8x32xf32> -> vector<8x32xf32>
    %10 = arith.addf %6, %9 : vector<8x32xf32>
    %cst_9 = arith.constant dense<0.000000e+00> : vector<32xf32>
    %11 = vector.multi_reduction <add>, %10, %cst_9 [0] : vector<8x32xf32> to vector<32xf32>
    %12 = vector.shape_cast %11 : vector<32xf32> to vector<1x32xf32>
    %cst_10 = arith.constant 8.000000e+00 : f32
    %13 = vector.broadcast %cst_10 : f32 to vector<1x32xf32>
    %14 = arith.divf %12, %13 : vector<1x32xf32>
    %15 = vector.broadcast %14 : vector<1x32xf32> to vector<8x32xf32>
    %16 = arith.subf %10, %15 : vector<8x32xf32>
    %17 = arith.mulf %16, %16 : vector<8x32xf32>
    %cst_11 = arith.constant dense<0.000000e+00> : vector<32xf32>
    %18 = vector.multi_reduction <add>, %17, %cst_11 [0] : vector<8x32xf32> to vector<32xf32>
    %19 = vector.shape_cast %18 : vector<32xf32> to vector<1x32xf32>
    %cst_12 = arith.constant 8.000000e+00 : f32
    %20 = vector.broadcast %cst_12 : f32 to vector<1x32xf32>
    %21 = arith.divf %19, %20 : vector<1x32xf32>
    %22 = vector.broadcast %14 : vector<1x32xf32> to vector<8x32xf32>
    %23 = arith.subf %10, %22 : vector<8x32xf32>
    %cst_13 = arith.constant 9.99999974E-6 : f32
    %24 = vector.broadcast %cst_13 : f32 to vector<1x32xf32>
    %25 = arith.addf %21, %24 : vector<1x32xf32>
    %26 = math.rsqrt %25 : vector<1x32xf32>
    %27 = vector.broadcast %26 : vector<1x32xf32> to vector<8x32xf32>
    %28 = arith.mulf %23, %27 : vector<8x32xf32>
    %cst_14 = arith.constant 0.000000e+00 : f32
    %29 = vector.broadcast %cst_14 : f32 to vector<8x32xf32>
    %30 = arith.cmpf oge, %28, %29 : vector<8x32xf32>
    %cst_15 = arith.constant 0.00999999977 : f32
    %31 = vector.broadcast %cst_15 : f32 to vector<8x32xf32>
    %32 = arith.mulf %28, %31 : vector<8x32xf32>
    %33 = arith.select %30, %28, %32 : vector<8x32xi1>, vector<8x32xf32>
    %c0_16 = arith.constant 0 : index
    %c0_17 = arith.constant 0 : index
    %34 = vector.load %arg4[%c0_16, %c0_17] : memref<32x32xbf16, #tpu.memory_space<vmem>>, vector<32x32xbf16>
    %35 = arith.truncf %33 : vector<8x32xf32> to vector<8x32xbf16>
    %cst_18 = arith.constant dense<0.000000e+00> : vector<8x32xf32>
    %36 = tpu.matmul %35, %34, %cst_18 {dimension_numbers = #tpu.dot_dimension_numbers<[1], [0], [0], [1], [0, 0, 1, 1], [], []>} : vector<8x32xbf16>, vector<32x32xbf16>, vector<8x32xf32> -> vector<8x32xf32>
    %cst_19 = arith.constant dense<0.000000e+00> : vector<32xf32>
    %37 = vector.multi_reduction <add>, %36, %cst_19 [0] : vector<8x32xf32> to vector<32xf32>
    %38 = vector.shape_cast %37 : vector<32xf32> to vector<1x32xf32>
    %cst_20 = arith.constant 8.000000e+00 : f32
    %39 = vector.broadcast %cst_20 : f32 to vector<1x32xf32>
    %40 = arith.divf %38, %39 : vector<1x32xf32>
    %41 = vector.broadcast %40 : vector<1x32xf32> to vector<8x32xf32>
    %42 = arith.subf %36, %41 : vector<8x32xf32>
    %43 = arith.mulf %42, %42 : vector<8x32xf32>
    %cst_21 = arith.constant dense<0.000000e+00> : vector<32xf32>
    %44 = vector.multi_reduction <add>, %43, %cst_21 [0] : vector<8x32xf32> to vector<32xf32>
    %45 = vector.shape_cast %44 : vector<32xf32> to vector<1x32xf32>
    %cst_22 = arith.constant 8.000000e+00 : f32
    %46 = vector.broadcast %cst_22 : f32 to vector<1x32xf32>
    %47 = arith.divf %45, %46 : vector<1x32xf32>
    %48 = vector.broadcast %40 : vector<1x32xf32> to vector<8x32xf32>
    %49 = arith.subf %36, %48 : vector<8x32xf32>
    %cst_23 = arith.constant 9.99999974E-6 : f32
    %50 = vector.broadcast %cst_23 : f32 to vector<1x32xf32>
    %51 = arith.addf %47, %50 : vector<1x32xf32>
    %52 = math.rsqrt %51 : vector<1x32xf32>
    %53 = vector.broadcast %52 : vector<1x32xf32> to vector<8x32xf32>
    %54 = arith.mulf %49, %53 : vector<8x32xf32>
    %cst_24 = arith.constant 0.000000e+00 : f32
    %55 = vector.broadcast %cst_24 : f32 to vector<8x32xf32>
    %56 = arith.cmpf oge, %54, %55 : vector<8x32xf32>
    %cst_25 = arith.constant 0.00999999977 : f32
    %57 = vector.broadcast %cst_25 : f32 to vector<8x32xf32>
    %58 = arith.mulf %54, %57 : vector<8x32xf32>
    %59 = arith.select %56, %54, %58 : vector<8x32xi1>, vector<8x32xf32>
    %60 = arith.addf %0, %59 : vector<8x32xf32>
    %c0_26 = arith.constant 0 : index
    %c0_27 = arith.constant 0 : index
    %61 = vector.load %arg5[%c0_26, %c0_27] : memref<8x32xf32, #tpu.memory_space<vmem>>, vector<8x32xf32>
    tpu.vector_store %arg5[%c0_26, %c0_27], %60 {strides = array<i32>} : memref<8x32xf32, #tpu.memory_space<vmem>>, vector<8x32xf32>,
    return
  }
}

module attributes {stable_mosaic.version = 11 : i64} {
  func.func @kernel(%arg0: memref<16x32xf32, #tpu.memory_space<vmem>>, %arg1: memref<8x16xbf16, #tpu.memory_space<vmem>>, %arg2: memref<8x16xbf16, #tpu.memory_space<vmem>>, %arg3: memref<32x64xbf16, #tpu.memory_space<vmem>>, %arg4: memref<32x64xbf16, #tpu.memory_space<vmem>>, %arg5: memref<32x32xbf16, #tpu.memory_space<vmem>>, %arg6: memref<8x32xf32, #tpu.memory_space<vmem>>) attributes {dimension_semantics = [], scalar_prefetch = 0 : i64, scratch_operands = 0 : i64, tpu.core_type = #tpu.core_type<tc>} {
    %c0 = arith.constant 0 : index
    %c0_0 = arith.constant 0 : index
    %0 = vector.load %arg0[%c0, %c0_0] : memref<16x32xf32, #tpu.memory_space<vmem>>, vector<16x32xf32>
    %c0_1 = arith.constant 0 : index
    %c0_2 = arith.constant 0 : index
    %1 = vector.load %arg1[%c0_1, %c0_2] : memref<8x16xbf16, #tpu.memory_space<vmem>>, vector<8x16xbf16>
    %2 = arith.truncf %0 : vector<16x32xf32> to vector<16x32xbf16>
    %cst = arith.constant dense<0.000000e+00> : vector<8x32xf32>
    %3 = tpu.matmul %1, %2, %cst {dimension_numbers = #tpu.dot_dimension_numbers<[1], [0], [0], [1], [0, 0, 1, 1], [], []>} : vector<8x16xbf16>, vector<16x32xbf16>, vector<8x32xf32> -> vector<8x32xf32>
    %c0_3 = arith.constant 0 : index
    %c0_4 = arith.constant 0 : index
    %4 = vector.load %arg2[%c0_3, %c0_4] : memref<8x16xbf16, #tpu.memory_space<vmem>>, vector<8x16xbf16>
    %5 = arith.truncf %0 : vector<16x32xf32> to vector<16x32xbf16>
    %cst_5 = arith.constant dense<0.000000e+00> : vector<8x32xf32>
    %6 = tpu.matmul %4, %5, %cst_5 {dimension_numbers = #tpu.dot_dimension_numbers<[1], [0], [0], [1], [0, 0, 1, 1], [], []>} : vector<8x16xbf16>, vector<16x32xbf16>, vector<8x32xf32> -> vector<8x32xf32>
    %c0_6 = arith.constant 0 : index
    %c0_7 = arith.constant 0 : index
    %7 = vector.load %arg3[%c0_6, %c0_7] : memref<32x64xbf16, #tpu.memory_space<vmem>>, vector<32x64xbf16>
    %8 = arith.truncf %3 : vector<8x32xf32> to vector<8x32xbf16>
    %cst_8 = arith.constant dense<0.000000e+00> : vector<8x64xf32>
    %9 = tpu.matmul %8, %7, %cst_8 {dimension_numbers = #tpu.dot_dimension_numbers<[1], [0], [0], [1], [0, 0, 1, 1], [], []>} : vector<8x32xbf16>, vector<32x64xbf16>, vector<8x64xf32> -> vector<8x64xf32>
    %c0_9 = arith.constant 0 : index
    %c0_10 = arith.constant 0 : index
    %10 = vector.load %arg4[%c0_9, %c0_10] : memref<32x64xbf16, #tpu.memory_space<vmem>>, vector<32x64xbf16>
    %11 = arith.truncf %6 : vector<8x32xf32> to vector<8x32xbf16>
    %cst_11 = arith.constant dense<0.000000e+00> : vector<8x64xf32>
    %12 = tpu.matmul %11, %10, %cst_11 {dimension_numbers = #tpu.dot_dimension_numbers<[1], [0], [0], [1], [0, 0, 1, 1], [], []>} : vector<8x32xbf16>, vector<32x64xbf16>, vector<8x64xf32> -> vector<8x64xf32>
    %13 = arith.addf %9, %12 : vector<8x64xf32>
    %cst_12 = arith.constant dense<0.000000e+00> : vector<64xf32>
    %14 = vector.multi_reduction <add>, %13, %cst_12 [0] : vector<8x64xf32> to vector<64xf32>
    %15 = vector.shape_cast %14 : vector<64xf32> to vector<1x64xf32>
    %cst_13 = arith.constant 8.000000e+00 : f32
    %16 = vector.broadcast %cst_13 : f32 to vector<1x64xf32>
    %17 = arith.divf %15, %16 : vector<1x64xf32>
    %18 = vector.broadcast %17 : vector<1x64xf32> to vector<8x64xf32>
    %19 = arith.subf %13, %18 : vector<8x64xf32>
    %20 = arith.mulf %19, %19 : vector<8x64xf32>
    %cst_14 = arith.constant dense<0.000000e+00> : vector<64xf32>
    %21 = vector.multi_reduction <add>, %20, %cst_14 [0] : vector<8x64xf32> to vector<64xf32>
    %22 = vector.shape_cast %21 : vector<64xf32> to vector<1x64xf32>
    %cst_15 = arith.constant 8.000000e+00 : f32
    %23 = vector.broadcast %cst_15 : f32 to vector<1x64xf32>
    %24 = arith.divf %22, %23 : vector<1x64xf32>
    %25 = vector.broadcast %17 : vector<1x64xf32> to vector<8x64xf32>
    %26 = arith.subf %13, %25 : vector<8x64xf32>
    %cst_16 = arith.constant 9.99999974E-6 : f32
    %27 = vector.broadcast %cst_16 : f32 to vector<1x64xf32>
    %28 = arith.addf %24, %27 : vector<1x64xf32>
    %29 = math.rsqrt %28 : vector<1x64xf32>
    %30 = vector.broadcast %29 : vector<1x64xf32> to vector<8x64xf32>
    %31 = arith.mulf %26, %30 : vector<8x64xf32>
    %cst_17 = arith.constant 0.000000e+00 : f32
    %32 = vector.broadcast %cst_17 : f32 to vector<8x64xf32>
    %33 = arith.cmpf oge, %31, %32 : vector<8x64xf32>
    %cst_18 = arith.constant 0.00999999977 : f32
    %34 = vector.broadcast %cst_18 : f32 to vector<8x64xf32>
    %35 = arith.mulf %31, %34 : vector<8x64xf32>
    %36 = arith.select %33, %31, %35 : vector<8x64xi1>, vector<8x64xf32>
    %37 = vector.extract_strided_slice %36 {offsets = [0, 0], sizes = [8, 32], strides = [1, 1]} : vector<8x64xf32> to vector<8x32xf32>
    %38 = vector.extract_strided_slice %36 {offsets = [0, 32], sizes = [8, 32], strides = [1, 1]} : vector<8x64xf32> to vector<8x32xf32>
    %c0_19 = arith.constant 0 : index
    %c0_20 = arith.constant 0 : index
    %39 = vector.load %arg5[%c0_19, %c0_20] : memref<32x32xbf16, #tpu.memory_space<vmem>>, vector<32x32xbf16>
    %40 = arith.truncf %37 : vector<8x32xf32> to vector<8x32xbf16>
    %cst_21 = arith.constant dense<0.000000e+00> : vector<8x32xf32>
    %41 = tpu.matmul %40, %39, %cst_21 {dimension_numbers = #tpu.dot_dimension_numbers<[1], [0], [0], [1], [0, 0, 1, 1], [], []>} : vector<8x32xbf16>, vector<32x32xbf16>, vector<8x32xf32> -> vector<8x32xf32>
    %cst_22 = arith.constant dense<0.000000e+00> : vector<32xf32>
    %42 = vector.multi_reduction <add>, %41, %cst_22 [0] : vector<8x32xf32> to vector<32xf32>
    %43 = vector.shape_cast %42 : vector<32xf32> to vector<1x32xf32>
    %cst_23 = arith.constant 8.000000e+00 : f32
    %44 = vector.broadcast %cst_23 : f32 to vector<1x32xf32>
    %45 = arith.divf %43, %44 : vector<1x32xf32>
    %46 = vector.broadcast %45 : vector<1x32xf32> to vector<8x32xf32>
    %47 = arith.subf %41, %46 : vector<8x32xf32>
    %48 = arith.mulf %47, %47 : vector<8x32xf32>
    %cst_24 = arith.constant dense<0.000000e+00> : vector<32xf32>
    %49 = vector.multi_reduction <add>, %48, %cst_24 [0] : vector<8x32xf32> to vector<32xf32>
    %50 = vector.shape_cast %49 : vector<32xf32> to vector<1x32xf32>
    %cst_25 = arith.constant 8.000000e+00 : f32
    %51 = vector.broadcast %cst_25 : f32 to vector<1x32xf32>
    %52 = arith.divf %50, %51 : vector<1x32xf32>
    %53 = vector.broadcast %45 : vector<1x32xf32> to vector<8x32xf32>
    %54 = arith.subf %41, %53 : vector<8x32xf32>
    %cst_26 = arith.constant 9.99999974E-6 : f32
    %55 = vector.broadcast %cst_26 : f32 to vector<1x32xf32>
    %56 = arith.addf %52, %55 : vector<1x32xf32>
    %57 = math.rsqrt %56 : vector<1x32xf32>
    %58 = vector.broadcast %57 : vector<1x32xf32> to vector<8x32xf32>
    %59 = arith.mulf %54, %58 : vector<8x32xf32>
    %cst_27 = arith.constant 0.000000e+00 : f32
    %60 = vector.broadcast %cst_27 : f32 to vector<8x32xf32>
    %61 = arith.cmpf oge, %59, %60 : vector<8x32xf32>
    %cst_28 = arith.constant 0.00999999977 : f32
    %62 = vector.broadcast %cst_28 : f32 to vector<8x32xf32>
    %63 = arith.mulf %59, %62 : vector<8x32xf32>
    %64 = arith.select %61, %59, %63 : vector<8x32xi1>, vector<8x32xf32>
    %65 = arith.addf %38, %64 : vector<8x32xf32>
    %c0_29 = arith.constant 0 : index
    %c0_30 = arith.constant 0 : index
    %66 = vector.load %arg6[%c0_29, %c0_30] : memref<8x32xf32, #tpu.memory_space<vmem>>, vector<8x32xf32>
    tpu.vector_store %arg6[%c0_29, %c0_30], %65 {strides = array<i32>} : memref<8x32xf32, #tpu.memory_space<vmem>>, vector<8x32xf32>,
    return
  }
}

module attributes {stable_mosaic.version = 11 : i64} {
  func.func @kernel(%arg0: memref<8x32xf32, #tpu.memory_space<vmem>>, %arg1: memref<4x8xbf16, #tpu.memory_space<vmem>>, %arg2: memref<4x8xbf16, #tpu.memory_space<vmem>>, %arg3: memref<32x128xbf16, #tpu.memory_space<vmem>>, %arg4: memref<32x128xbf16, #tpu.memory_space<vmem>>, %arg5: memref<64x64xbf16, #tpu.memory_space<vmem>>, %arg6: memref<4x64xf32, #tpu.memory_space<vmem>>) attributes {dimension_semantics = [], scalar_prefetch = 0 : i64, scratch_operands = 0 : i64, tpu.core_type = #tpu.core_type<tc>} {
    %c0 = arith.constant 0 : index
    %c0_0 = arith.constant 0 : index
    %0 = vector.load %arg0[%c0, %c0_0] : memref<8x32xf32, #tpu.memory_space<vmem>>, vector<8x32xf32>
    %c0_1 = arith.constant 0 : index
    %c0_2 = arith.constant 0 : index
    %1 = vector.load %arg1[%c0_1, %c0_2] : memref<4x8xbf16, #tpu.memory_space<vmem>>, vector<4x8xbf16>
    %2 = arith.truncf %0 : vector<8x32xf32> to vector<8x32xbf16>
    %cst = arith.constant dense<0.000000e+00> : vector<4x32xf32>
    %3 = tpu.matmul %1, %2, %cst {dimension_numbers = #tpu.dot_dimension_numbers<[1], [0], [0], [1], [0, 0, 1, 1], [], []>} : vector<4x8xbf16>, vector<8x32xbf16>, vector<4x32xf32> -> vector<4x32xf32>
    %c0_3 = arith.constant 0 : index
    %c0_4 = arith.constant 0 : index
    %4 = vector.load %arg2[%c0_3, %c0_4] : memref<4x8xbf16, #tpu.memory_space<vmem>>, vector<4x8xbf16>
    %5 = arith.truncf %0 : vector<8x32xf32> to vector<8x32xbf16>
    %cst_5 = arith.constant dense<0.000000e+00> : vector<4x32xf32>
    %6 = tpu.matmul %4, %5, %cst_5 {dimension_numbers = #tpu.dot_dimension_numbers<[1], [0], [0], [1], [0, 0, 1, 1], [], []>} : vector<4x8xbf16>, vector<8x32xbf16>, vector<4x32xf32> -> vector<4x32xf32>
    %c0_6 = arith.constant 0 : index
    %c0_7 = arith.constant 0 : index
    %7 = vector.load %arg3[%c0_6, %c0_7] : memref<32x128xbf16, #tpu.memory_space<vmem>>, vector<32x128xbf16>
    %8 = arith.truncf %3 : vector<4x32xf32> to vector<4x32xbf16>
    %cst_8 = arith.constant dense<0.000000e+00> : vector<4x128xf32>
    %9 = tpu.matmul %8, %7, %cst_8 {dimension_numbers = #tpu.dot_dimension_numbers<[1], [0], [0], [1], [0, 0, 1, 1], [], []>} : vector<4x32xbf16>, vector<32x128xbf16>, vector<4x128xf32> -> vector<4x128xf32>
    %c0_9 = arith.constant 0 : index
    %c0_10 = arith.constant 0 : index
    %10 = vector.load %arg4[%c0_9, %c0_10] : memref<32x128xbf16, #tpu.memory_space<vmem>>, vector<32x128xbf16>
    %11 = arith.truncf %6 : vector<4x32xf32> to vector<4x32xbf16>
    %cst_11 = arith.constant dense<0.000000e+00> : vector<4x128xf32>
    %12 = tpu.matmul %11, %10, %cst_11 {dimension_numbers = #tpu.dot_dimension_numbers<[1], [0], [0], [1], [0, 0, 1, 1], [], []>} : vector<4x32xbf16>, vector<32x128xbf16>, vector<4x128xf32> -> vector<4x128xf32>
    %13 = arith.addf %9, %12 : vector<4x128xf32>
    %cst_12 = arith.constant dense<0.000000e+00> : vector<128xf32>
    %14 = vector.multi_reduction <add>, %13, %cst_12 [0] : vector<4x128xf32> to vector<128xf32>
    %15 = vector.shape_cast %14 : vector<128xf32> to vector<1x128xf32>
    %cst_13 = arith.constant 4.000000e+00 : f32
    %16 = vector.broadcast %cst_13 : f32 to vector<1x128xf32>
    %17 = arith.divf %15, %16 : vector<1x128xf32>
    %18 = vector.broadcast %17 : vector<1x128xf32> to vector<4x128xf32>
    %19 = arith.subf %13, %18 : vector<4x128xf32>
    %20 = arith.mulf %19, %19 : vector<4x128xf32>
    %cst_14 = arith.constant dense<0.000000e+00> : vector<128xf32>
    %21 = vector.multi_reduction <add>, %20, %cst_14 [0] : vector<4x128xf32> to vector<128xf32>
    %22 = vector.shape_cast %21 : vector<128xf32> to vector<1x128xf32>
    %cst_15 = arith.constant 4.000000e+00 : f32
    %23 = vector.broadcast %cst_15 : f32 to vector<1x128xf32>
    %24 = arith.divf %22, %23 : vector<1x128xf32>
    %25 = vector.broadcast %17 : vector<1x128xf32> to vector<4x128xf32>
    %26 = arith.subf %13, %25 : vector<4x128xf32>
    %cst_16 = arith.constant 9.99999974E-6 : f32
    %27 = vector.broadcast %cst_16 : f32 to vector<1x128xf32>
    %28 = arith.addf %24, %27 : vector<1x128xf32>
    %29 = math.rsqrt %28 : vector<1x128xf32>
    %30 = vector.broadcast %29 : vector<1x128xf32> to vector<4x128xf32>
    %31 = arith.mulf %26, %30 : vector<4x128xf32>
    %cst_17 = arith.constant 0.000000e+00 : f32
    %32 = vector.broadcast %cst_17 : f32 to vector<4x128xf32>
    %33 = arith.cmpf oge, %31, %32 : vector<4x128xf32>
    %cst_18 = arith.constant 0.00999999977 : f32
    %34 = vector.broadcast %cst_18 : f32 to vector<4x128xf32>
    %35 = arith.mulf %31, %34 : vector<4x128xf32>
    %36 = arith.select %33, %31, %35 : vector<4x128xi1>, vector<4x128xf32>
    %37 = vector.extract_strided_slice %36 {offsets = [0, 0], sizes = [4, 64], strides = [1, 1]} : vector<4x128xf32> to vector<4x64xf32>
    %38 = vector.extract_strided_slice %36 {offsets = [0, 64], sizes = [4, 64], strides = [1, 1]} : vector<4x128xf32> to vector<4x64xf32>
    %c0_19 = arith.constant 0 : index
    %c0_20 = arith.constant 0 : index
    %39 = vector.load %arg5[%c0_19, %c0_20] : memref<64x64xbf16, #tpu.memory_space<vmem>>, vector<64x64xbf16>
    %40 = arith.truncf %37 : vector<4x64xf32> to vector<4x64xbf16>
    %cst_21 = arith.constant dense<0.000000e+00> : vector<4x64xf32>
    %41 = tpu.matmul %40, %39, %cst_21 {dimension_numbers = #tpu.dot_dimension_numbers<[1], [0], [0], [1], [0, 0, 1, 1], [], []>} : vector<4x64xbf16>, vector<64x64xbf16>, vector<4x64xf32> -> vector<4x64xf32>
    %cst_22 = arith.constant dense<0.000000e+00> : vector<64xf32>
    %42 = vector.multi_reduction <add>, %41, %cst_22 [0] : vector<4x64xf32> to vector<64xf32>
    %43 = vector.shape_cast %42 : vector<64xf32> to vector<1x64xf32>
    %cst_23 = arith.constant 4.000000e+00 : f32
    %44 = vector.broadcast %cst_23 : f32 to vector<1x64xf32>
    %45 = arith.divf %43, %44 : vector<1x64xf32>
    %46 = vector.broadcast %45 : vector<1x64xf32> to vector<4x64xf32>
    %47 = arith.subf %41, %46 : vector<4x64xf32>
    %48 = arith.mulf %47, %47 : vector<4x64xf32>
    %cst_24 = arith.constant dense<0.000000e+00> : vector<64xf32>
    %49 = vector.multi_reduction <add>, %48, %cst_24 [0] : vector<4x64xf32> to vector<64xf32>
    %50 = vector.shape_cast %49 : vector<64xf32> to vector<1x64xf32>
    %cst_25 = arith.constant 4.000000e+00 : f32
    %51 = vector.broadcast %cst_25 : f32 to vector<1x64xf32>
    %52 = arith.divf %50, %51 : vector<1x64xf32>
    %53 = vector.broadcast %45 : vector<1x64xf32> to vector<4x64xf32>
    %54 = arith.subf %41, %53 : vector<4x64xf32>
    %cst_26 = arith.constant 9.99999974E-6 : f32
    %55 = vector.broadcast %cst_26 : f32 to vector<1x64xf32>
    %56 = arith.addf %52, %55 : vector<1x64xf32>
    %57 = math.rsqrt %56 : vector<1x64xf32>
    %58 = vector.broadcast %57 : vector<1x64xf32> to vector<4x64xf32>
    %59 = arith.mulf %54, %58 : vector<4x64xf32>
    %cst_27 = arith.constant 0.000000e+00 : f32
    %60 = vector.broadcast %cst_27 : f32 to vector<4x64xf32>
    %61 = arith.cmpf oge, %59, %60 : vector<4x64xf32>
    %cst_28 = arith.constant 0.00999999977 : f32
    %62 = vector.broadcast %cst_28 : f32 to vector<4x64xf32>
    %63 = arith.mulf %59, %62 : vector<4x64xf32>
    %64 = arith.select %61, %59, %63 : vector<4x64xi1>, vector<4x64xf32>
    %65 = arith.addf %38, %64 : vector<4x64xf32>
    %c0_29 = arith.constant 0 : index
    %c0_30 = arith.constant 0 : index
    %66 = vector.load %arg6[%c0_29, %c0_30] : memref<4x64xf32, #tpu.memory_space<vmem>>, vector<4x64xf32>
    tpu.vector_store %arg6[%c0_29, %c0_30], %65 {strides = array<i32>} : memref<4x64xf32, #tpu.memory_space<vmem>>, vector<4x64xf32>,
    return
  }
}

module attributes {stable_mosaic.version = 11 : i64} {
  func.func @kernel(%arg0: memref<4x64xf32, #tpu.memory_space<vmem>>, %arg1: memref<2x4xbf16, #tpu.memory_space<vmem>>, %arg2: memref<2x4xbf16, #tpu.memory_space<vmem>>, %arg3: memref<64x128xbf16, #tpu.memory_space<vmem>>, %arg4: memref<64x128xbf16, #tpu.memory_space<vmem>>, %arg5: memref<64x64xbf16, #tpu.memory_space<vmem>>, %arg6: memref<64x16xbf16, #tpu.memory_space<vmem>>, %arg7: memref<1x16xf32, #tpu.memory_space<vmem>>, %arg8: memref<16x1xbf16, #tpu.memory_space<vmem>>, %arg9: memref<1x1xf32, #tpu.memory_space<vmem>>, %arg10: memref<2x1xf32, #tpu.memory_space<vmem>>) attributes {dimension_semantics = [], scalar_prefetch = 0 : i64, scratch_operands = 0 : i64, tpu.core_type = #tpu.core_type<tc>} {
    %c0 = arith.constant 0 : index
    %c0_0 = arith.constant 0 : index
    %0 = vector.load %arg0[%c0, %c0_0] : memref<4x64xf32, #tpu.memory_space<vmem>>, vector<4x64xf32>
    %c0_1 = arith.constant 0 : index
    %c0_2 = arith.constant 0 : index
    %1 = vector.load %arg1[%c0_1, %c0_2] : memref<2x4xbf16, #tpu.memory_space<vmem>>, vector<2x4xbf16>
    %2 = arith.truncf %0 : vector<4x64xf32> to vector<4x64xbf16>
    %cst = arith.constant dense<0.000000e+00> : vector<2x64xf32>
    %3 = tpu.matmul %1, %2, %cst {dimension_numbers = #tpu.dot_dimension_numbers<[1], [0], [0], [1], [0, 0, 1, 1], [], []>} : vector<2x4xbf16>, vector<4x64xbf16>, vector<2x64xf32> -> vector<2x64xf32>
    %c0_3 = arith.constant 0 : index
    %c0_4 = arith.constant 0 : index
    %4 = vector.load %arg2[%c0_3, %c0_4] : memref<2x4xbf16, #tpu.memory_space<vmem>>, vector<2x4xbf16>
    %5 = arith.truncf %0 : vector<4x64xf32> to vector<4x64xbf16>
    %cst_5 = arith.constant dense<0.000000e+00> : vector<2x64xf32>
    %6 = tpu.matmul %4, %5, %cst_5 {dimension_numbers = #tpu.dot_dimension_numbers<[1], [0], [0], [1], [0, 0, 1, 1], [], []>} : vector<2x4xbf16>, vector<4x64xbf16>, vector<2x64xf32> -> vector<2x64xf32>
    %c0_6 = arith.constant 0 : index
    %c0_7 = arith.constant 0 : index
    %7 = vector.load %arg3[%c0_6, %c0_7] : memref<64x128xbf16, #tpu.memory_space<vmem>>, vector<64x128xbf16>
    %8 = arith.truncf %3 : vector<2x64xf32> to vector<2x64xbf16>
    %cst_8 = arith.constant dense<0.000000e+00> : vector<2x128xf32>
    %9 = tpu.matmul %8, %7, %cst_8 {dimension_numbers = #tpu.dot_dimension_numbers<[1], [0], [0], [1], [0, 0, 1, 1], [], []>} : vector<2x64xbf16>, vector<64x128xbf16>, vector<2x128xf32> -> vector<2x128xf32>
    %c0_9 = arith.constant 0 : index
    %c0_10 = arith.constant 0 : index
    %10 = vector.load %arg4[%c0_9, %c0_10] : memref<64x128xbf16, #tpu.memory_space<vmem>>, vector<64x128xbf16>
    %11 = arith.truncf %6 : vector<2x64xf32> to vector<2x64xbf16>
    %cst_11 = arith.constant dense<0.000000e+00> : vector<2x128xf32>
    %12 = tpu.matmul %11, %10, %cst_11 {dimension_numbers = #tpu.dot_dimension_numbers<[1], [0], [0], [1], [0, 0, 1, 1], [], []>} : vector<2x64xbf16>, vector<64x128xbf16>, vector<2x128xf32> -> vector<2x128xf32>
    %13 = arith.addf %9, %12 : vector<2x128xf32>
    %cst_12 = arith.constant 0.000000e+00 : f32
    %14 = vector.broadcast %cst_12 : f32 to vector<2x128xf32>
    %15 = arith.cmpf oge, %13, %14 : vector<2x128xf32>
    %cst_13 = arith.constant 0.00999999977 : f32
    %16 = vector.broadcast %cst_13 : f32 to vector<2x128xf32>
    %17 = arith.mulf %13, %16 : vector<2x128xf32>
    %18 = arith.select %15, %13, %17 : vector<2x128xi1>, vector<2x128xf32>
    %19 = vector.extract_strided_slice %18 {offsets = [0, 0], sizes = [2, 64], strides = [1, 1]} : vector<2x128xf32> to vector<2x64xf32>
    %20 = vector.extract_strided_slice %18 {offsets = [0, 64], sizes = [2, 64], strides = [1, 1]} : vector<2x128xf32> to vector<2x64xf32>
    %c0_14 = arith.constant 0 : index
    %c0_15 = arith.constant 0 : index
    %21 = vector.load %arg5[%c0_14, %c0_15] : memref<64x64xbf16, #tpu.memory_space<vmem>>, vector<64x64xbf16>
    %22 = arith.truncf %19 : vector<2x64xf32> to vector<2x64xbf16>
    %cst_16 = arith.constant dense<0.000000e+00> : vector<2x64xf32>
    %23 = tpu.matmul %22, %21, %cst_16 {dimension_numbers = #tpu.dot_dimension_numbers<[1], [0], [0], [1], [0, 0, 1, 1], [], []>} : vector<2x64xbf16>, vector<64x64xbf16>, vector<2x64xf32> -> vector<2x64xf32>
    %cst_17 = arith.constant 0.000000e+00 : f32
    %24 = vector.broadcast %cst_17 : f32 to vector<2x64xf32>
    %25 = arith.cmpf oge, %23, %24 : vector<2x64xf32>
    %cst_18 = arith.constant 0.00999999977 : f32
    %26 = vector.broadcast %cst_18 : f32 to vector<2x64xf32>
    %27 = arith.mulf %23, %26 : vector<2x64xf32>
    %28 = arith.select %25, %23, %27 : vector<2x64xi1>, vector<2x64xf32>
    %29 = arith.addf %20, %28 : vector<2x64xf32>
    %c0_19 = arith.constant 0 : index
    %c0_20 = arith.constant 0 : index
    %30 = vector.load %arg6[%c0_19, %c0_20] : memref<64x16xbf16, #tpu.memory_space<vmem>>, vector<64x16xbf16>
    %31 = arith.truncf %29 : vector<2x64xf32> to vector<2x64xbf16>
    %cst_21 = arith.constant dense<0.000000e+00> : vector<2x16xf32>
    %32 = tpu.matmul %31, %30, %cst_21 {dimension_numbers = #tpu.dot_dimension_numbers<[1], [0], [0], [1], [0, 0, 1, 1], [], []>} : vector<2x64xbf16>, vector<64x16xbf16>, vector<2x16xf32> -> vector<2x16xf32>
    %c0_22 = arith.constant 0 : index
    %c0_23 = arith.constant 0 : index
    %33 = vector.load %arg7[%c0_22, %c0_23] : memref<1x16xf32, #tpu.memory_space<vmem>>, vector<1x16xf32>
    %34 = vector.broadcast %33 : vector<1x16xf32> to vector<2x16xf32>
    %35 = arith.addf %32, %34 : vector<2x16xf32>
    %cst_24 = arith.constant 0.000000e+00 : f32
    %36 = vector.broadcast %cst_24 : f32 to vector<2x16xf32>
    %37 = arith.cmpf oge, %35, %36 : vector<2x16xf32>
    %cst_25 = arith.constant 0.00999999977 : f32
    %38 = vector.broadcast %cst_25 : f32 to vector<2x16xf32>
    %39 = arith.mulf %35, %38 : vector<2x16xf32>
    %40 = arith.select %37, %35, %39 : vector<2x16xi1>, vector<2x16xf32>
    %c0_26 = arith.constant 0 : index
    %c0_27 = arith.constant 0 : index
    %41 = vector.load %arg8[%c0_26, %c0_27] : memref<16x1xbf16, #tpu.memory_space<vmem>>, vector<16x1xbf16>
    %42 = arith.truncf %40 : vector<2x16xf32> to vector<2x16xbf16>
    %cst_28 = arith.constant dense<0.000000e+00> : vector<2x1xf32>
    %43 = tpu.matmul %42, %41, %cst_28 {dimension_numbers = #tpu.dot_dimension_numbers<[1], [0], [0], [1], [0, 0, 1, 1], [], []>} : vector<2x16xbf16>, vector<16x1xbf16>, vector<2x1xf32> -> vector<2x1xf32>
    %c0_29 = arith.constant 0 : index
    %c0_30 = arith.constant 0 : index
    %44 = vector.load %arg9[%c0_29, %c0_30] : memref<1x1xf32, #tpu.memory_space<vmem>>, vector<1x1xf32>
    %45 = vector.broadcast %44 : vector<1x1xf32> to vector<2x1xf32>
    %46 = arith.addf %43, %45 : vector<2x1xf32>
    %c0_31 = arith.constant 0 : index
    %c0_32 = arith.constant 0 : index
    %47 = vector.load %arg10[%c0_31, %c0_32] : memref<2x1xf32, #tpu.memory_space<vmem>>, vector<2x1xf32>
    tpu.vector_store %arg10[%c0_31, %c0_32], %46 {strides = array<i32>} : memref<2x1xf32, #tpu.memory_space<vmem>>, vector<2x1xf32>,
    return
  }
}

module attributes {stable_mosaic.version = 11 : i64} {
  func.func @kernel(%arg0: memref<4x64xf32, #tpu.memory_space<vmem>>, %arg1: memref<4x4xbf16, #tpu.memory_space<vmem>>, %arg2: memref<64x64xbf16, #tpu.memory_space<vmem>>, %arg3: memref<64x64xbf16, #tpu.memory_space<vmem>>, %arg4: memref<64x64xbf16, #tpu.memory_space<vmem>>, %arg5: memref<4x64xf32, #tpu.memory_space<vmem>>) attributes {dimension_semantics = [], scalar_prefetch = 0 : i64, scratch_operands = 0 : i64, tpu.core_type = #tpu.core_type<tc>} {
    %c0 = arith.constant 0 : index
    %c0_0 = arith.constant 0 : index
    %0 = vector.load %arg0[%c0, %c0_0] : memref<4x64xf32, #tpu.memory_space<vmem>>, vector<4x64xf32>
    %c0_1 = arith.constant 0 : index
    %c0_2 = arith.constant 0 : index
    %1 = vector.load %arg1[%c0_1, %c0_2] : memref<4x4xbf16, #tpu.memory_space<vmem>>, vector<4x4xbf16>
    %2 = arith.truncf %0 : vector<4x64xf32> to vector<4x64xbf16>
    %cst = arith.constant dense<0.000000e+00> : vector<4x64xf32>
    %3 = tpu.matmul %1, %2, %cst {dimension_numbers = #tpu.dot_dimension_numbers<[1], [0], [0], [1], [0, 0, 1, 1], [], []>} : vector<4x4xbf16>, vector<4x64xbf16>, vector<4x64xf32> -> vector<4x64xf32>
    %c0_3 = arith.constant 0 : index
    %c0_4 = arith.constant 0 : index
    %4 = vector.load %arg2[%c0_3, %c0_4] : memref<64x64xbf16, #tpu.memory_space<vmem>>, vector<64x64xbf16>
    %5 = arith.truncf %0 : vector<4x64xf32> to vector<4x64xbf16>
    %cst_5 = arith.constant dense<0.000000e+00> : vector<4x64xf32>
    %6 = tpu.matmul %5, %4, %cst_5 {dimension_numbers = #tpu.dot_dimension_numbers<[1], [0], [0], [1], [0, 0, 1, 1], [], []>} : vector<4x64xbf16>, vector<64x64xbf16>, vector<4x64xf32> -> vector<4x64xf32>
    %c0_6 = arith.constant 0 : index
    %c0_7 = arith.constant 0 : index
    %7 = vector.load %arg3[%c0_6, %c0_7] : memref<64x64xbf16, #tpu.memory_space<vmem>>, vector<64x64xbf16>
    %8 = arith.truncf %3 : vector<4x64xf32> to vector<4x64xbf16>
    %cst_8 = arith.constant dense<0.000000e+00> : vector<4x64xf32>
    %9 = tpu.matmul %8, %7, %cst_8 {dimension_numbers = #tpu.dot_dimension_numbers<[1], [0], [0], [1], [0, 0, 1, 1], [], []>} : vector<4x64xbf16>, vector<64x64xbf16>, vector<4x64xf32> -> vector<4x64xf32>
    %10 = arith.addf %6, %9 : vector<4x64xf32>
    %cst_9 = arith.constant 0.000000e+00 : f32
    %11 = vector.broadcast %cst_9 : f32 to vector<4x64xf32>
    %12 = arith.cmpf oge, %10, %11 : vector<4x64xf32>
    %cst_10 = arith.constant 0.00999999977 : f32
    %13 = vector.broadcast %cst_10 : f32 to vector<4x64xf32>
    %14 = arith.mulf %10, %13 : vector<4x64xf32>
    %15 = arith.select %12, %10, %14 : vector<4x64xi1>, vector<4x64xf32>
    %c0_11 = arith.constant 0 : index
    %c0_12 = arith.constant 0 : index
    %16 = vector.load %arg4[%c0_11, %c0_12] : memref<64x64xbf16, #tpu.memory_space<vmem>>, vector<64x64xbf16>
    %17 = arith.truncf %15 : vector<4x64xf32> to vector<4x64xbf16>
    %cst_13 = arith.constant dense<0.000000e+00> : vector<4x64xf32>
    %18 = tpu.matmul %17, %16, %cst_13 {dimension_numbers = #tpu.dot_dimension_numbers<[1], [0], [0], [1], [0, 0, 1, 1], [], []>} : vector<4x64xbf16>, vector<64x64xbf16>, vector<4x64xf32> -> vector<4x64xf32>
    %cst_14 = arith.constant dense<0.000000e+00> : vector<64xf32>
    %19 = vector.multi_reduction <add>, %18, %cst_14 [0] : vector<4x64xf32> to vector<64xf32>
    %20 = vector.shape_cast %19 : vector<64xf32> to vector<1x64xf32>
    %cst_15 = arith.constant 4.000000e+00 : f32
    %21 = vector.broadcast %cst_15 : f32 to vector<1x64xf32>
    %22 = arith.divf %20, %21 : vector<1x64xf32>
    %23 = vector.broadcast %22 : vector<1x64xf32> to vector<4x64xf32>
    %24 = arith.subf %18, %23 : vector<4x64xf32>
    %25 = arith.mulf %24, %24 : vector<4x64xf32>
    %cst_16 = arith.constant dense<0.000000e+00> : vector<64xf32>
    %26 = vector.multi_reduction <add>, %25, %cst_16 [0] : vector<4x64xf32> to vector<64xf32>
    %27 = vector.shape_cast %26 : vector<64xf32> to vector<1x64xf32>
    %cst_17 = arith.constant 4.000000e+00 : f32
    %28 = vector.broadcast %cst_17 : f32 to vector<1x64xf32>
    %29 = arith.divf %27, %28 : vector<1x64xf32>
    %30 = vector.broadcast %22 : vector<1x64xf32> to vector<4x64xf32>
    %31 = arith.subf %18, %30 : vector<4x64xf32>
    %cst_18 = arith.constant 9.99999974E-6 : f32
    %32 = vector.broadcast %cst_18 : f32 to vector<1x64xf32>
    %33 = arith.addf %29, %32 : vector<1x64xf32>
    %34 = math.rsqrt %33 : vector<1x64xf32>
    %35 = vector.broadcast %34 : vector<1x64xf32> to vector<4x64xf32>
    %36 = arith.mulf %31, %35 : vector<4x64xf32>
    %cst_19 = arith.constant 0.000000e+00 : f32
    %37 = vector.broadcast %cst_19 : f32 to vector<4x64xf32>
    %38 = arith.cmpf oge, %36, %37 : vector<4x64xf32>
    %cst_20 = arith.constant 0.00999999977 : f32
    %39 = vector.broadcast %cst_20 : f32 to vector<4x64xf32>
    %40 = arith.mulf %36, %39 : vector<4x64xf32>
    %41 = arith.select %38, %36, %40 : vector<4x64xi1>, vector<4x64xf32>
    %42 = arith.addf %0, %41 : vector<4x64xf32>
    %c0_21 = arith.constant 0 : index
    %c0_22 = arith.constant 0 : index
    %43 = vector.load %arg5[%c0_21, %c0_22] : memref<4x64xf32, #tpu.memory_space<vmem>>, vector<4x64xf32>
    tpu.vector_store %arg5[%c0_21, %c0_22], %42 {strides = array<i32>} : memref<4x64xf32, #tpu.memory_space<vmem>>, vector<4x64xf32>,
    return
  }
}

</mosaic_0001>

<llo_original>
// kernel: _lambda_.7
$region0: #{_lambda_.7}
  #allocation0 [shape = 'u32[]', space=smem, size = 0x4, offset = 0x4, fixed_abs, tag = 'smem constant byte address 0x4 - core index']
  #allocation1 [shape = 'u32[144,128]{1,0:T(1,128)}', space=vmem, size = 0x12000, scoped, tag = 'internal scratch']
  %s0 = inlined_call_operand.vmem [shape: f32[16,32], index: 0, kind: input, shape index: {}]
  %s1 = inlined_call_operand.vmem [shape: bf16[8,16], index: 1, kind: input, shape index: {}]
  %s2 = inlined_call_operand.vmem [shape: bf16[8,16], index: 2, kind: input, shape index: {}]
  %s3 = inlined_call_operand.vmem [shape: bf16[32,64], index: 3, kind: input, shape index: {}]
  %s4 = inlined_call_operand.vmem [shape: bf16[32,64], index: 4, kind: input, shape index: {}]
  %s5 = inlined_call_operand.vmem [shape: bf16[32,32], index: 5, kind: input, shape index: {}]
  %s6 = inlined_call_operand.vmem [shape: f32[8,32], index: 6, kind: output, shape index: {}]
  %s7 = sld [smem:[#allocation0]]
  $region34: #{_lambda_.7} parent=0
    _
  %s9 = ssub.s32 1, %s7
  %s10 = scalar_select 0, %s9, %s7
  // Predicated region
  $region2: #{_lambda_.7} parent=0 // pred_check
    _
  $region3: #{_lambda_.7} parent=0 // pred_check_branch
    %12 = sbr.rel (0) target = $region5
  $region4: #{_lambda_.7} parent=0 // pred_region
    _
  $region5: #{_lambda_.7} parent=0 // pred_fallthru
    _
  // Predicated region
  $region6: #{_lambda_.7} parent=0 // pred_check
    _
  $region7: #{_lambda_.7} parent=0 // pred_check_branch
    %14 = sbr.rel (0) target = $region9
  $region8: #{_lambda_.7} parent=0 // pred_region
    _
  $region9: #{_lambda_.7} parent=0 // pred_fallthru
    _
  // Predicated region
  $region10: #{_lambda_.7} parent=0 // pred_check
    _
  $region11: #{_lambda_.7} parent=0 // pred_check_branch
    %16 = sbr.rel (0) target = $region13
  $region12: #{_lambda_.7} parent=0 // pred_region
    _
  $region13: #{_lambda_.7} parent=0 // pred_fallthru
    _
  // Predicated region
  $region14: #{_lambda_.7} parent=0 // pred_check
    _
  $region15: #{_lambda_.7} parent=0 // pred_check_branch
    %18 = sbr.rel (0) target = $region17
  $region16: #{_lambda_.7} parent=0 // pred_region
    _
  $region17: #{_lambda_.7} parent=0 // pred_fallthru
    _
  // Predicated region
  $region18: #{_lambda_.7} parent=0 // pred_check
    _
  $region19: #{_lambda_.7} parent=0 // pred_check_branch
    %20 = sbr.rel (0) target = $region21
  $region20: #{_lambda_.7} parent=0 // pred_region
    _
  $region21: #{_lambda_.7} parent=0 // pred_fallthru
    _
  // Predicated region
  $region22: #{_lambda_.7} parent=0 // pred_check
    _
  $region23: #{_lambda_.7} parent=0 // pred_check_branch
    %22 = sbr.rel (0) target = $region25
  $region24: #{_lambda_.7} parent=0 // pred_region
    _
  $region25: #{_lambda_.7} parent=0 // pred_fallthru
    _
  %v24 = vld [vmem:[%s0] sm:$0xff]
  %v25 = vld [vmem:[%s0 + $0x8] sm:$0xff]
  %v26 = vld [vmem:[%s1] sm:$0xf]
  %v27 = vpack.c.bf16 %v25, %v24
  %vm28 = vcmask 130048
  %v30 = vsel %vm28, %v26, 0
  %32 = vmatprep.subr.bf16.mxu0 0
  %33 = vmatpush1.bf16.msra.mxu0 0
  %34 = vmatprep.subr.bf16.mxu0 0
  %35 = vmatpush1.bf16.msra.mxu0 0
  %36 = vmatprep.subr.bf16.mxu0 0
  %37 = vmatpush1.bf16.msra.mxu0 0
  %38 = vmatprep.subr.bf16.mxu0 0
  %39 = vmatpush1.bf16.msra.mxu0 0
  %40 = vmatprep.subr.bf16.mxu0 0
  %41 = vmatpush1.bf16.msra.mxu0 0
  %42 = vmatprep.subr.bf16.mxu0 0
  %43 = vmatpush1.bf16.msra.mxu0 0
  %44 = vmatprep.subr.bf16.mxu0 0
  %45 = vmatpush1.bf16.msra.mxu0 0
  %46 = vmatprep.subr.bf16.mxu0 0
  %47 = vmatpush1.bf16.msra.mxu0 %v27
  %48 = vmatprep.subr.bf16.mxu0 0
  %49 = vmatpush2.bf16.msra.mxu0 0
  %50 = vmatprep.subr.bf16.mxu0 0
  %51 = vmatpush2.bf16.msra.mxu0 0
  %52 = vmatprep.subr.bf16.mxu0 0
  %53 = vmatpush2.bf16.msra.mxu0 0
  %54 = vmatprep.subr.bf16.mxu0 0
  %55 = vmatpush2.bf16.msra.mxu0 0
  %56 = vmatprep.subr.bf16.mxu0 0
  %57 = vmatpush2.bf16.msra.mxu0 0
  %58 = vmatprep.subr.bf16.mxu0 0
  %59 = vmatpush2.bf16.msra.mxu0 0
  %60 = vmatprep.subr.bf16.mxu0 0
  %61 = vmatpush2.bf16.msra.mxu0 0
  %62 = vmatprep.subr.bf16.mxu0 0
  %63 = vmatpush2.bf16.msra.mxu0 0
  %64 = vmatprep.mubr.bf16.mxu0 0
  %65 = vmatmul.mubr.bf16.gmra.mxu0 %v30
  %v66 = vpop.f32.mrf.mxu0
  %v67 = vadd.f32 0.0, %v66
  %v68 = vpop.f32.mrf.mxu0
  %v69 = vpop.f32.mrf.mxu0
  %v70 = vpop.f32.mrf.mxu0
  %71 = vdwg.mxu0
  %v72 = vld [vmem:[%s2] sm:$0xf]
  %v74 = vsel %vm28, %v72, 0
  %76 = vmatprep.subr.bf16.mxu0 0
  %77 = vmatpush1.bf16.msra.mxu0 0
  %78 = vmatprep.subr.bf16.mxu0 0
  %79 = vmatpush1.bf16.msra.mxu0 0
  %80 = vmatprep.subr.bf16.mxu0 0
  %81 = vmatpush1.bf16.msra.mxu0 0
  %82 = vmatprep.subr.bf16.mxu0 0
  %83 = vmatpush1.bf16.msra.mxu0 0
  %84 = vmatprep.subr.bf16.mxu0 0
  %85 = vmatpush1.bf16.msra.mxu0 0
  %86 = vmatprep.subr.bf16.mxu0 0
  %87 = vmatpush1.bf16.msra.mxu0 0
  %88 = vmatprep.subr.bf16.mxu0 0
  %89 = vmatpush1.bf16.msra.mxu0 0
  %90 = vmatprep.subr.bf16.mxu0 0
  %91 = vmatpush1.bf16.msra.mxu0 %v27
  %92 = vmatprep.subr.bf16.mxu0 0
  %93 = vmatpush2.bf16.msra.mxu0 0
  %94 = vmatprep.subr.bf16.mxu0 0
  %95 = vmatpush2.bf16.msra.mxu0 0
  %96 = vmatprep.subr.bf16.mxu0 0
  %97 = vmatpush2.bf16.msra.mxu0 0
  %98 = vmatprep.subr.bf16.mxu0 0
  %99 = vmatpush2.bf16.msra.mxu0 0
  %100 = vmatprep.subr.bf16.mxu0 0
  %101 = vmatpush2.bf16.msra.mxu0 0
  %102 = vmatprep.subr.bf16.mxu0 0
  %103 = vmatpush2.bf16.msra.mxu0 0
  %104 = vmatprep.subr.bf16.mxu0 0
  %105 = vmatpush2.bf16.msra.mxu0 0
  %106 = vmatprep.subr.bf16.mxu0 0
  %107 = vmatpush2.bf16.msra.mxu0 0
  %108 = vmatprep.mubr.bf16.mxu0 0
  %109 = vmatmul.mubr.bf16.gmra.mxu0 %v74
  %v110 = vpop.f32.mrf.mxu0
  %v111 = vadd.f32 0.0, %v110
  %v112 = vpop.f32.mrf.mxu0
  %v113 = vpop.f32.mrf.mxu0
  %v114 = vpop.f32.mrf.mxu0
  %115 = vdwg.mxu0
  %v116 = vld [vmem:[%s3] sm:$0xf]
  %v117 = vld [vmem:[%s3 + $0x4] sm:$0xf]
  %v118 = vld [vmem:[%s3 + $0x8] sm:$0xf]
  %v119 = vld [vmem:[%s3 + $0xc] sm:$0xf]
  %v120 = vpack.c.bf16 %v67, %v67
  %v121 = vld [vmem:[%s4] sm:$0xf]
  %v122 = vld [vmem:[%s4 + $0x4] sm:$0xf]
  %v123 = vld [vmem:[%s4 + $0x8] sm:$0xf]
  %v124 = vld [vmem:[%s4 + $0xc] sm:$0xf]
  %v125 = vpack.c.bf16 %v111, %v111
  %v130 = vunpack.c.l.b16 %v121
  %v131 = vunpack.c.l.b16 %v122
  %v132 = vunpack.c.l.b16 %v123
  %v133 = vunpack.c.l.b16 %v124
  %v134 = vpack.c.b16 %v131, %v130
  %v135 = vpack.c.b16 %v133, %v132
  %vm138 = vcmask 261120
  %v140 = vsel %vm138, %v125, 0
  %142 = vmatprep.subr.bf16.mxu0 0
  %143 = vmatpush1.bf16.msra.mxu0 0
  %144 = vmatprep.subr.bf16.mxu0 0
  %145 = vmatpush1.bf16.msra.mxu0 0
  %146 = vmatprep.subr.bf16.mxu0 0
  %147 = vmatpush1.bf16.msra.mxu0 0
  %148 = vmatprep.subr.bf16.mxu0 0
  %149 = vmatpush1.bf16.msra.mxu0 0
  %150 = vmatprep.subr.bf16.mxu0 0
  %151 = vmatpush1.bf16.msra.mxu0 0
  %152 = vmatprep.subr.bf16.mxu0 0
  %153 = vmatpush1.bf16.msra.mxu0 0
  %154 = vmatprep.subr.bf16.mxu0 0
  %155 = vmatpush1.bf16.msra.mxu0 %v135
  %156 = vmatprep.subr.bf16.mxu0 0
  %157 = vmatpush1.bf16.msra.mxu0 %v134
  %158 = vmatprep.subr.bf16.mxu0 0
  %159 = vmatpush2.bf16.msra.mxu0 0
  %160 = vmatprep.subr.bf16.mxu0 0
  %161 = vmatpush2.bf16.msra.mxu0 0
  %162 = vmatprep.subr.bf16.mxu0 0
  %163 = vmatpush2.bf16.msra.mxu0 0
  %164 = vmatprep.subr.bf16.mxu0 0
  %165 = vmatpush2.bf16.msra.mxu0 0
  %166 = vmatprep.subr.bf16.mxu0 0
  %167 = vmatpush2.bf16.msra.mxu0 0
  %168 = vmatprep.subr.bf16.mxu0 0
  %169 = vmatpush2.bf16.msra.mxu0 0
  %170 = vmatprep.subr.bf16.mxu0 0
  %171 = vmatpush2.bf16.msra.mxu0 0
  %172 = vmatprep.subr.bf16.mxu0 0
  %173 = vmatpush2.bf16.msra.mxu0 0
  %174 = vmatprep.mubr.bf16.mxu0 0
  %175 = vmatmul.mubr.bf16.gmra.mxu0 %v140
  %v176 = vpop.f32.mrf.mxu0
  %v177 = vadd.f32 0.0, %v176
  %v178 = vpop.f32.mrf.mxu0
  %v179 = vpop.f32.mrf.mxu0
  %v180 = vpop.f32.mrf.mxu0
  %181 = vdwg.mxu0
  %v186 = vunpack.c.l.b16 %v116
  %v187 = vunpack.c.l.b16 %v117
  %v188 = vunpack.c.l.b16 %v118
  %v189 = vunpack.c.l.b16 %v119
  %v190 = vpack.c.b16 %v187, %v186
  %v191 = vpack.c.b16 %v189, %v188
  %v195 = vsel %vm138, %v120, 0
  %197 = vmatprep.subr.bf16.mxu0 0
  %198 = vmatpush1.bf16.msra.mxu0 0
  %199 = vmatprep.subr.bf16.mxu0 0
  %200 = vmatpush1.bf16.msra.mxu0 0
  %201 = vmatprep.subr.bf16.mxu0 0
  %202 = vmatpush1.bf16.msra.mxu0 0
  %203 = vmatprep.subr.bf16.mxu0 0
  %204 = vmatpush1.bf16.msra.mxu0 0
  %205 = vmatprep.subr.bf16.mxu0 0
  %206 = vmatpush1.bf16.msra.mxu0 0
  %207 = vmatprep.subr.bf16.mxu0 0
  %208 = vmatpush1.bf16.msra.mxu0 0
  %209 = vmatprep.subr.bf16.mxu0 0
  %210 = vmatpush1.bf16.msra.mxu0 %v191
  %211 = vmatprep.subr.bf16.mxu0 0
  %212 = vmatpush1.bf16.msra.mxu0 %v190
  %213 = vmatprep.subr.bf16.mxu0 0
  %214 = vmatpush2.bf16.msra.mxu0 0
  %215 = vmatprep.subr.bf16.mxu0 0
  %216 = vmatpush2.bf16.msra.mxu0 0
  %217 = vmatprep.subr.bf16.mxu0 0
  %218 = vmatpush2.bf16.msra.mxu0 0
  %219 = vmatprep.subr.bf16.mxu0 0
  %220 = vmatpush2.bf16.msra.mxu0 0
  %221 = vmatprep.subr.bf16.mxu0 0
  %222 = vmatpush2.bf16.msra.mxu0 0
  %223 = vmatprep.subr.bf16.mxu0 0
  %224 = vmatpush2.bf16.msra.mxu0 0
  %225 = vmatprep.subr.bf16.mxu0 0
  %226 = vmatpush2.bf16.msra.mxu0 0
  %227 = vmatprep.subr.bf16.mxu0 0
  %228 = vmatpush2.bf16.msra.mxu0 0
  %229 = vmatprep.mubr.bf16.mxu0 0
  %230 = vmatmul.mubr.bf16.gmra.mxu0 %v195
  %v231 = vpop.f32.mrf.mxu0
  %v232 = vadd.f32 %v177, %v231
  %v233 = vpop.f32.mrf.mxu0
  %v234 = vpop.f32.mrf.mxu0
  %v235 = vpop.f32.mrf.mxu0
  %236 = vdwg.mxu0
  %vm237 = vcmask 523264
  %v238 = vsel %vm237, %v232, 0.0
  %v239 = vrot.slane %v238, 4
  %v240 = vadd.f32 %v238, %v239
  %v241 = vrot.slane %v240, 2
  %v242 = vadd.f32 %v240, %v241
  %v243 = vrot.slane %v242, 1
  %v244 = vadd.f32 %v242, %v243
  %v245 = vrcp.pop 8.0
  %v246 = vmul.f32 %v244, %v245
  %v247 = vsub.f32 %v232, %v246
  %v248 = vmul.f32 %v247, %v247
  %v249 = vsel %vm237, %v248, 0.0
  %v250 = vrot.slane %v249, 4
  %v251 = vadd.f32 %v249, %v250
  %v252 = vrot.slane %v251, 2
  %v253 = vadd.f32 %v251, %v252
  %v254 = vrot.slane %v253, 1
  %v255 = vadd.f32 %v253, %v254
  %v256 = vmul.f32 %v255, %v245
  %v257 = vadd.f32 %v256, 1e-05
  %v258 = vrsqrt.pop %v257
  %v259 = vmul.f32 %v247, %v258
  %vm260 = vcmp.ge.f32.partialorder %v259, 0.0
  %v261 = vmul.f32 %v259, 0.01
  %v262 = vsel %vm260, %v259, %v261
  %v263 = vld [vmem:[%s5] sm:$0xf]
  %v264 = vld [vmem:[%s5 + $0x4] sm:$0xf]
  %v265 = vld [vmem:[%s5 + $0x8] sm:$0xf]
  %v266 = vld [vmem:[%s5 + $0xc] sm:$0xf]
  %v267 = vpack.c.bf16 %v262, %v262
  %v272 = vunpack.c.l.b16 %v263
  %v273 = vunpack.c.l.b16 %v264
  %v274 = vunpack.c.l.b16 %v265
  %v275 = vunpack.c.l.b16 %v266
  %v276 = vpack.c.b16 %v273, %v272
  %v277 = vpack.c.b16 %v275, %v274
  %v281 = vsel %vm138, %v267, 0
  %283 = vmatprep.subr.bf16.mxu0 0
  %284 = vmatpush1.bf16.msra.mxu0 0
  %285 = vmatprep.subr.bf16.mxu0 0
  %286 = vmatpush1.bf16.msra.mxu0 0
  %287 = vmatprep.subr.bf16.mxu0 0
  %288 = vmatpush1.bf16.msra.mxu0 0
  %289 = vmatprep.subr.bf16.mxu0 0
  %290 = vmatpush1.bf16.msra.mxu0 0
  %291 = vmatprep.subr.bf16.mxu0 0
  %292 = vmatpush1.bf16.msra.mxu0 0
  %293 = vmatprep.subr.bf16.mxu0 0
  %294 = vmatpush1.bf16.msra.mxu0 0
  %295 = vmatprep.subr.bf16.mxu0 0
  %296 = vmatpush1.bf16.msra.mxu0 %v277
  %297 = vmatprep.subr.bf16.mxu0 0
  %298 = vmatpush1.bf16.msra.mxu0 %v276
  %299 = vmatprep.subr.bf16.mxu0 0
  %300 = vmatpush2.bf16.msra.mxu0 0
  %301 = vmatprep.subr.bf16.mxu0 0
  %302 = vmatpush2.bf16.msra.mxu0 0
  %303 = vmatprep.subr.bf16.mxu0 0
  %304 = vmatpush2.bf16.msra.mxu0 0
  %305 = vmatprep.subr.bf16.mxu0 0
  %306 = vmatpush2.bf16.msra.mxu0 0
  %307 = vmatprep.subr.bf16.mxu0 0
  %308 = vmatpush2.bf16.msra.mxu0 0
  %309 = vmatprep.subr.bf16.mxu0 0
  %310 = vmatpush2.bf16.msra.mxu0 0
  %311 = vmatprep.subr.bf16.mxu0 0
  %312 = vmatpush2.bf16.msra.mxu0 0
  %313 = vmatprep.subr.bf16.mxu0 0
  %314 = vmatpush2.bf16.msra.mxu0 0
  %315 = vmatprep.mubr.bf16.mxu0 0
  %316 = vmatmul.mubr.bf16.gmra.mxu0 %v281
  %v317 = vpop.f32.mrf.mxu0
  %v318 = vadd.f32 0.0, %v317
  %v319 = vpop.f32.mrf.mxu0
  %v320 = vpop.f32.mrf.mxu0
  %v321 = vpop.f32.mrf.mxu0
  %322 = vdwg.mxu0
  %v323 = vsel %vm138, %v318, 0.0
  %v324 = vrot.slane %v323, 4
  %v325 = vadd.f32 %v323, %v324
  %v326 = vrot.slane %v325, 2
  %v327 = vadd.f32 %v325, %v326
  %v328 = vrot.slane %v327, 1
  %v329 = vadd.f32 %v327, %v328
  %v330 = vmul.f32 %v329, %v245
  %v331 = vsub.f32 %v318, %v330
  %v332 = vmul.f32 %v331, %v331
  %v333 = vsel %vm138, %v332, 0.0
  %v334 = vrot.slane %v333, 4
  %v335 = vadd.f32 %v333, %v334
  %v336 = vrot.slane %v335, 2
  %v337 = vadd.f32 %v335, %v336
  %v338 = vrot.slane %v337, 1
  %v339 = vadd.f32 %v337, %v338
  %v340 = vmul.f32 %v339, %v245
  %v341 = vadd.f32 %v340, 1e-05
  %v342 = vrsqrt.pop %v341
  %v343 = vmul.f32 %v331, %v342
  %vm344 = vcmp.ge.f32.partialorder %v343, 0.0
  %v345 = vmul.f32 %v343, 0.01
  %v346 = vsel %vm344, %v343, %v345
  %348 = vrot.lane.b32.xlu0 %v346, 32
  %v349 = vpop.permute.xlu0 %348
  %v351 = vadd.f32 %v262, %v349
  %353 = vrot.lane.b32.xlu0 %v351, 96
  %v354 = vpop.permute.xlu0 %353
  %356 = vst.msk [vmem:[%s6] sm:$0xff] %vm138, %v354
  // Predicated region
  $region26: #{_lambda_.7} parent=0 // pred_check
    _
  $region27: #{_lambda_.7} parent=0 // pred_check_branch
    %358 = sbr.rel (0) target = $region29
  $region28: #{_lambda_.7} parent=0 // pred_region
    _
  $region29: #{_lambda_.7} parent=0 // pred_fallthru
    _
  // Predicated region
  $region30: #{_lambda_.7} parent=0 // pred_check
    _
  $region31: #{_lambda_.7} parent=0 // pred_check_branch
    %360 = sbr.rel (0) target = $region33
  $region32: #{_lambda_.7} parent=0 // pred_region
    _
  $region33: #{_lambda_.7} parent=0 // pred_fallthru
    _

// kernel: _lambda_.9
$region0: #{_lambda_.9}
  #allocation0 [shape = 'u32[]', space=smem, size = 0x4, offset = 0x4, fixed_abs, tag = 'smem constant byte address 0x4 - core index']
  #allocation1 [shape = 'u32[144,128]{1,0:T(1,128)}', space=vmem, size = 0x12000, scoped, tag = 'internal scratch']
  %s0 = inlined_call_operand.vmem [shape: f32[8,32], index: 0, kind: input, shape index: {}]
  %s1 = inlined_call_operand.vmem [shape: bf16[4,8], index: 1, kind: input, shape index: {}]
  %s2 = inlined_call_operand.vmem [shape: bf16[4,8], index: 2, kind: input, shape index: {}]
  %s3 = inlined_call_operand.vmem [shape: bf16[32,128], index: 3, kind: input, shape index: {}]
  %s4 = inlined_call_operand.vmem [shape: bf16[32,128], index: 4, kind: input, shape index: {}]
  %s5 = inlined_call_operand.vmem [shape: bf16[64,64], index: 5, kind: input, shape index: {}]
  %s6 = inlined_call_operand.vmem [shape: f32[4,64], index: 6, kind: output, shape index: {}]
  %s7 = sld [smem:[#allocation0]]
  $region34: #{_lambda_.9} parent=0
    _
  %s9 = ssub.s32 1, %s7
  %s10 = scalar_select 0, %s9, %s7
  // Predicated region
  $region2: #{_lambda_.9} parent=0 // pred_check
    _
  $region3: #{_lambda_.9} parent=0 // pred_check_branch
    %12 = sbr.rel (0) target = $region5
  $region4: #{_lambda_.9} parent=0 // pred_region
    _
  $region5: #{_lambda_.9} parent=0 // pred_fallthru
    _
  // Predicated region
  $region6: #{_lambda_.9} parent=0 // pred_check
    _
  $region7: #{_lambda_.9} parent=0 // pred_check_branch
    %14 = sbr.rel (0) target = $region9
  $region8: #{_lambda_.9} parent=0 // pred_region
    _
  $region9: #{_lambda_.9} parent=0 // pred_fallthru
    _
  // Predicated region
  $region10: #{_lambda_.9} parent=0 // pred_check
    _
  $region11: #{_lambda_.9} parent=0 // pred_check_branch
    %16 = sbr.rel (0) target = $region13
  $region12: #{_lambda_.9} parent=0 // pred_region
    _
  $region13: #{_lambda_.9} parent=0 // pred_fallthru
    _
  // Predicated region
  $region14: #{_lambda_.9} parent=0 // pred_check
    _
  $region15: #{_lambda_.9} parent=0 // pred_check_branch
    %18 = sbr.rel (0) target = $region17
  $region16: #{_lambda_.9} parent=0 // pred_region
    _
  $region17: #{_lambda_.9} parent=0 // pred_fallthru
    _
  // Predicated region
  $region18: #{_lambda_.9} parent=0 // pred_check
    _
  $region19: #{_lambda_.9} parent=0 // pred_check_branch
    %20 = sbr.rel (0) target = $region21
  $region20: #{_lambda_.9} parent=0 // pred_region
    _
  $region21: #{_lambda_.9} parent=0 // pred_fallthru
    _
  // Predicated region
  $region22: #{_lambda_.9} parent=0 // pred_check
    _
  $region23: #{_lambda_.9} parent=0 // pred_check_branch
    %22 = sbr.rel (0) target = $region25
  $region24: #{_lambda_.9} parent=0 // pred_region
    _
  $region25: #{_lambda_.9} parent=0 // pred_fallthru
    _
  %v24 = vld [vmem:[%s0] sm:$0xff]
  %v25 = vld [vmem:[%s1] sm:$0x3]
  %v26 = vpack.c.bf16 %v24, %v24
  %vm27 = vcmask 64512
  %v29 = vsel %vm27, %v25, 0
  %vm31 = vcmask 1043456
  %v33 = vsel %vm31, %v26, 0
  %35 = vmatprep.subr.bf16.mxu0 0
  %36 = vmatpush1.bf16.msra.mxu0 0
  %37 = vmatprep.subr.bf16.mxu0 0
  %38 = vmatpush1.bf16.msra.mxu0 0
  %39 = vmatprep.subr.bf16.mxu0 0
  %40 = vmatpush1.bf16.msra.mxu0 0
  %41 = vmatprep.subr.bf16.mxu0 0
  %42 = vmatpush1.bf16.msra.mxu0 0
  %43 = vmatprep.subr.bf16.mxu0 0
  %44 = vmatpush1.bf16.msra.mxu0 0
  %45 = vmatprep.subr.bf16.mxu0 0
  %46 = vmatpush1.bf16.msra.mxu0 0
  %47 = vmatprep.subr.bf16.mxu0 0
  %48 = vmatpush1.bf16.msra.mxu0 0
  %49 = vmatprep.subr.bf16.mxu0 0
  %50 = vmatpush1.bf16.msra.mxu0 %v33
  %51 = vmatprep.subr.bf16.mxu0 0
  %52 = vmatpush2.bf16.msra.mxu0 0
  %53 = vmatprep.subr.bf16.mxu0 0
  %54 = vmatpush2.bf16.msra.mxu0 0
  %55 = vmatprep.subr.bf16.mxu0 0
  %56 = vmatpush2.bf16.msra.mxu0 0
  %57 = vmatprep.subr.bf16.mxu0 0
  %58 = vmatpush2.bf16.msra.mxu0 0
  %59 = vmatprep.subr.bf16.mxu0 0
  %60 = vmatpush2.bf16.msra.mxu0 0
  %61 = vmatprep.subr.bf16.mxu0 0
  %62 = vmatpush2.bf16.msra.mxu0 0
  %63 = vmatprep.subr.bf16.mxu0 0
  %64 = vmatpush2.bf16.msra.mxu0 0
  %65 = vmatprep.subr.bf16.mxu0 0
  %66 = vmatpush2.bf16.msra.mxu0 0
  %67 = vmatprep.mubr.bf16.mxu0 0
  %68 = vmatmul.mubr.bf16.gmra.mxu0 %v29
  %v69 = vpop.f32.mrf.mxu0
  %v70 = vadd.f32 0.0, %v69
  %v71 = vpop.f32.mrf.mxu0
  %v72 = vpop.f32.mrf.mxu0
  %v73 = vpop.f32.mrf.mxu0
  %74 = vdwg.mxu0
  %v75 = vld [vmem:[%s2] sm:$0x3]
  %v77 = vsel %vm27, %v75, 0
  %79 = vmatprep.subr.bf16.mxu0 0
  %80 = vmatpush1.bf16.msra.mxu0 0
  %81 = vmatprep.subr.bf16.mxu0 0
  %82 = vmatpush1.bf16.msra.mxu0 0
  %83 = vmatprep.subr.bf16.mxu0 0
  %84 = vmatpush1.bf16.msra.mxu0 0
  %85 = vmatprep.subr.bf16.mxu0 0
  %86 = vmatpush1.bf16.msra.mxu0 0
  %87 = vmatprep.subr.bf16.mxu0 0
  %88 = vmatpush1.bf16.msra.mxu0 0
  %89 = vmatprep.subr.bf16.mxu0 0
  %90 = vmatpush1.bf16.msra.mxu0 0
  %91 = vmatprep.subr.bf16.mxu0 0
  %92 = vmatpush1.bf16.msra.mxu0 0
  %93 = vmatprep.subr.bf16.mxu0 0
  %94 = vmatpush1.bf16.msra.mxu0 %v33
  %95 = vmatprep.subr.bf16.mxu0 0
  %96 = vmatpush2.bf16.msra.mxu0 0
  %97 = vmatprep.subr.bf16.mxu0 0
  %98 = vmatpush2.bf16.msra.mxu0 0
  %99 = vmatprep.subr.bf16.mxu0 0
  %100 = vmatpush2.bf16.msra.mxu0 0
  %101 = vmatprep.subr.bf16.mxu0 0
  %102 = vmatpush2.bf16.msra.mxu0 0
  %103 = vmatprep.subr.bf16.mxu0 0
  %104 = vmatpush2.bf16.msra.mxu0 0
  %105 = vmatprep.subr.bf16.mxu0 0
  %106 = vmatpush2.bf16.msra.mxu0 0
  %107 = vmatprep.subr.bf16.mxu0 0
  %108 = vmatpush2.bf16.msra.mxu0 0
  %109 = vmatprep.subr.bf16.mxu0 0
  %110 = vmatpush2.bf16.msra.mxu0 0
  %111 = vmatprep.mubr.bf16.mxu0 0
  %112 = vmatmul.mubr.bf16.gmra.mxu0 %v77
  %v113 = vpop.f32.mrf.mxu0
  %v114 = vadd.f32 0.0, %v113
  %v115 = vpop.f32.mrf.mxu0
  %v116 = vpop.f32.mrf.mxu0
  %v117 = vpop.f32.mrf.mxu0
  %118 = vdwg.mxu0
  %v119 = vld [vmem:[%s3] sm:$0xf]
  %v120 = vld [vmem:[%s3 + $0x4] sm:$0xf]
  %v121 = vld [vmem:[%s3 + $0x8] sm:$0xf]
  %v122 = vld [vmem:[%s3 + $0xc] sm:$0xf]
  %v123 = vpack.c.bf16 %v70, %v70
  %v124 = vld [vmem:[%s4] sm:$0xf]
  %v125 = vld [vmem:[%s4 + $0x4] sm:$0xf]
  %v126 = vld [vmem:[%s4 + $0x8] sm:$0xf]
  %v127 = vld [vmem:[%s4 + $0xc] sm:$0xf]
  %v128 = vpack.c.bf16 %v114, %v114
  %v133 = vunpack.c.l.b16 %v124
  %v134 = vunpack.c.l.b16 %v125
  %v135 = vunpack.c.l.b16 %v126
  %v136 = vunpack.c.l.b16 %v127
  %v137 = vpack.c.b16 %v134, %v133
  %v138 = vpack.c.b16 %v136, %v135
  %vm141 = vcmask 261120
  %v143 = vsel %vm141, %v128, 0
  %145 = vmatprep.subr.bf16.mxu0 0
  %146 = vmatpush1.bf16.msra.mxu0 0
  %147 = vmatprep.subr.bf16.mxu0 0
  %148 = vmatpush1.bf16.msra.mxu0 0
  %149 = vmatprep.subr.bf16.mxu0 0
  %150 = vmatpush1.bf16.msra.mxu0 0
  %151 = vmatprep.subr.bf16.mxu0 0
  %152 = vmatpush1.bf16.msra.mxu0 0
  %153 = vmatprep.subr.bf16.mxu0 0
  %154 = vmatpush1.bf16.msra.mxu0 0
  %155 = vmatprep.subr.bf16.mxu0 0
  %156 = vmatpush1.bf16.msra.mxu0 0
  %157 = vmatprep.subr.bf16.mxu0 0
  %158 = vmatpush1.bf16.msra.mxu0 %v138
  %159 = vmatprep.subr.bf16.mxu0 0
  %160 = vmatpush1.bf16.msra.mxu0 %v137
  %161 = vmatprep.subr.bf16.mxu0 0
  %162 = vmatpush2.bf16.msra.mxu0 0
  %163 = vmatprep.subr.bf16.mxu0 0
  %164 = vmatpush2.bf16.msra.mxu0 0
  %165 = vmatprep.subr.bf16.mxu0 0
  %166 = vmatpush2.bf16.msra.mxu0 0
  %167 = vmatprep.subr.bf16.mxu0 0
  %168 = vmatpush2.bf16.msra.mxu0 0
  %169 = vmatprep.subr.bf16.mxu0 0
  %170 = vmatpush2.bf16.msra.mxu0 0
  %171 = vmatprep.subr.bf16.mxu0 0
  %172 = vmatpush2.bf16.msra.mxu0 0
  %173 = vmatprep.subr.bf16.mxu0 0
  %174 = vmatpush2.bf16.msra.mxu0 0
  %175 = vmatprep.subr.bf16.mxu0 0
  %176 = vmatpush2.bf16.msra.mxu0 0
  %177 = vmatprep.mubr.bf16.mxu0 0
  %178 = vmatmul.mubr.bf16.gmra.mxu0 %v143
  %v179 = vpop.f32.mrf.mxu0
  %v180 = vadd.f32 0.0, %v179
  %v181 = vpop.f32.mrf.mxu0
  %v182 = vpop.f32.mrf.mxu0
  %v183 = vpop.f32.mrf.mxu0
  %184 = vdwg.mxu0
  %v189 = vunpack.c.l.b16 %v119
  %v190 = vunpack.c.l.b16 %v120
  %v191 = vunpack.c.l.b16 %v121
  %v192 = vunpack.c.l.b16 %v122
  %v193 = vpack.c.b16 %v190, %v189
  %v194 = vpack.c.b16 %v192, %v191
  %v198 = vsel %vm141, %v123, 0
  %200 = vmatprep.subr.bf16.mxu0 0
  %201 = vmatpush1.bf16.msra.mxu0 0
  %202 = vmatprep.subr.bf16.mxu0 0
  %203 = vmatpush1.bf16.msra.mxu0 0
  %204 = vmatprep.subr.bf16.mxu0 0
  %205 = vmatpush1.bf16.msra.mxu0 0
  %206 = vmatprep.subr.bf16.mxu0 0
  %207 = vmatpush1.bf16.msra.mxu0 0
  %208 = vmatprep.subr.bf16.mxu0 0
  %209 = vmatpush1.bf16.msra.mxu0 0
  %210 = vmatprep.subr.bf16.mxu0 0
  %211 = vmatpush1.bf16.msra.mxu0 0
  %212 = vmatprep.subr.bf16.mxu0 0
  %213 = vmatpush1.bf16.msra.mxu0 %v194
  %214 = vmatprep.subr.bf16.mxu0 0
  %215 = vmatpush1.bf16.msra.mxu0 %v193
  %216 = vmatprep.subr.bf16.mxu0 0
  %217 = vmatpush2.bf16.msra.mxu0 0
  %218 = vmatprep.subr.bf16.mxu0 0
  %219 = vmatpush2.bf16.msra.mxu0 0
  %220 = vmatprep.subr.bf16.mxu0 0
  %221 = vmatpush2.bf16.msra.mxu0 0
  %222 = vmatprep.subr.bf16.mxu0 0
  %223 = vmatpush2.bf16.msra.mxu0 0
  %224 = vmatprep.subr.bf16.mxu0 0
  %225 = vmatpush2.bf16.msra.mxu0 0
  %226 = vmatprep.subr.bf16.mxu0 0
  %227 = vmatpush2.bf16.msra.mxu0 0
  %228 = vmatprep.subr.bf16.mxu0 0
  %229 = vmatpush2.bf16.msra.mxu0 0
  %230 = vmatprep.subr.bf16.mxu0 0
  %231 = vmatpush2.bf16.msra.mxu0 0
  %232 = vmatprep.mubr.bf16.mxu0 0
  %233 = vmatmul.mubr.bf16.gmra.mxu0 %v198
  %v234 = vpop.f32.mrf.mxu0
  %v235 = vadd.f32 %v180, %v234
  %v236 = vpop.f32.mrf.mxu0
  %v237 = vpop.f32.mrf.mxu0
  %v238 = vpop.f32.mrf.mxu0
  %239 = vdwg.mxu0
  %v240 = vsel %vm31, %v235, 0.0
  %v241 = vrot.slane %v240, 4
  %v242 = vadd.f32 %v240, %v241
  %v243 = vrot.slane %v242, 2
  %v244 = vadd.f32 %v242, %v243
  %v245 = vrot.slane %v244, 1
  %v246 = vadd.f32 %v244, %v245
  %v247 = vrcp.pop 4.0
  %v248 = vmul.f32 %v246, %v247
  %v249 = vsub.f32 %v235, %v248
  %v250 = vmul.f32 %v249, %v249
  %v251 = vsel %vm31, %v250, 0.0
  %v252 = vrot.slane %v251, 4
  %v253 = vadd.f32 %v251, %v252
  %v254 = vrot.slane %v253, 2
  %v255 = vadd.f32 %v253, %v254
  %v256 = vrot.slane %v255, 1
  %v257 = vadd.f32 %v255, %v256
  %v258 = vmul.f32 %v257, %v247
  %v259 = vadd.f32 %v258, 1e-05
  %v260 = vrsqrt.pop %v259
  %v261 = vmul.f32 %v249, %v260
  %vm262 = vcmp.ge.f32.partialorder %v261, 0.0
  %v263 = vmul.f32 %v261, 0.01
  %v264 = vsel %vm262, %v261, %v263
  %v265 = vld [vmem:[%s5] sm:$0xf]
  %v266 = vld [vmem:[%s5 + $0x4] sm:$0xf]
  %v267 = vld [vmem:[%s5 + $0x8] sm:$0xf]
  %v268 = vld [vmem:[%s5 + $0xc] sm:$0xf]
  %v269 = vld [vmem:[%s5 + $0x10] sm:$0xf]
  %v270 = vld [vmem:[%s5 + $0x14] sm:$0xf]
  %v271 = vld [vmem:[%s5 + $0x18] sm:$0xf]
  %v272 = vld [vmem:[%s5 + $0x1c] sm:$0xf]
  %v273 = vpack.c.bf16 %v264, %v264
  %v282 = vunpack.c.l.b16 %v265
  %v283 = vunpack.c.l.b16 %v266
  %v284 = vunpack.c.l.b16 %v267
  %v285 = vunpack.c.l.b16 %v268
  %v286 = vunpack.c.l.b16 %v269
  %v287 = vunpack.c.l.b16 %v270
  %v288 = vunpack.c.l.b16 %v271
  %v289 = vunpack.c.l.b16 %v272
  %v290 = vpack.c.b16 %v283, %v282
  %v291 = vpack.c.b16 %v285, %v284
  %v292 = vpack.c.b16 %v287, %v286
  %v293 = vpack.c.b16 %v289, %v288
  %vm298 = vcmask 523264
  %v300 = vsel %vm298, %v273, 0
  %302 = vmatprep.subr.bf16.mxu0 0
  %303 = vmatpush1.bf16.msra.mxu0 0
  %304 = vmatprep.subr.bf16.mxu0 0
  %305 = vmatpush1.bf16.msra.mxu0 0
  %306 = vmatprep.subr.bf16.mxu0 0
  %307 = vmatpush1.bf16.msra.mxu0 0
  %308 = vmatprep.subr.bf16.mxu0 0
  %309 = vmatpush1.bf16.msra.mxu0 0
  %310 = vmatprep.subr.bf16.mxu0 0
  %311 = vmatpush1.bf16.msra.mxu0 %v293
  %312 = vmatprep.subr.bf16.mxu0 0
  %313 = vmatpush1.bf16.msra.mxu0 %v292
  %314 = vmatprep.subr.bf16.mxu0 0
  %315 = vmatpush1.bf16.msra.mxu0 %v291
  %316 = vmatprep.subr.bf16.mxu0 0
  %317 = vmatpush1.bf16.msra.mxu0 %v290
  %318 = vmatprep.subr.bf16.mxu0 0
  %319 = vmatpush2.bf16.msra.mxu0 0
  %320 = vmatprep.subr.bf16.mxu0 0
  %321 = vmatpush2.bf16.msra.mxu0 0
  %322 = vmatprep.subr.bf16.mxu0 0
  %323 = vmatpush2.bf16.msra.mxu0 0
  %324 = vmatprep.subr.bf16.mxu0 0
  %325 = vmatpush2.bf16.msra.mxu0 0
  %326 = vmatprep.subr.bf16.mxu0 0
  %327 = vmatpush2.bf16.msra.mxu0 0
  %328 = vmatprep.subr.bf16.mxu0 0
  %329 = vmatpush2.bf16.msra.mxu0 0
  %330 = vmatprep.subr.bf16.mxu0 0
  %331 = vmatpush2.bf16.msra.mxu0 0
  %332 = vmatprep.subr.bf16.mxu0 0
  %333 = vmatpush2.bf16.msra.mxu0 0
  %334 = vmatprep.mubr.bf16.mxu0 0
  %335 = vmatmul.mubr.bf16.gmra.mxu0 %v300
  %v336 = vpop.f32.mrf.mxu0
  %v337 = vadd.f32 0.0, %v336
  %v338 = vpop.f32.mrf.mxu0
  %v339 = vpop.f32.mrf.mxu0
  %v340 = vpop.f32.mrf.mxu0
  %341 = vdwg.mxu0
  %vm342 = vcmask 519168
  %v343 = vsel %vm342, %v337, 0.0
  %v344 = vrot.slane %v343, 4
  %v345 = vadd.f32 %v343, %v344
  %v346 = vrot.slane %v345, 2
  %v347 = vadd.f32 %v345, %v346
  %v348 = vrot.slane %v347, 1
  %v349 = vadd.f32 %v347, %v348
  %v350 = vmul.f32 %v349, %v247
  %v351 = vsub.f32 %v337, %v350
  %v352 = vmul.f32 %v351, %v351
  %v353 = vsel %vm342, %v352, 0.0
  %v354 = vrot.slane %v353, 4
  %v355 = vadd.f32 %v353, %v354
  %v356 = vrot.slane %v355, 2
  %v357 = vadd.f32 %v355, %v356
  %v358 = vrot.slane %v357, 1
  %v359 = vadd.f32 %v357, %v358
  %v360 = vmul.f32 %v359, %v247
  %v361 = vadd.f32 %v360, 1e-05
  %v362 = vrsqrt.pop %v361
  %v363 = vmul.f32 %v351, %v362
  %vm364 = vcmp.ge.f32.partialorder %v363, 0.0
  %v365 = vmul.f32 %v363, 0.01
  %v366 = vsel %vm364, %v363, %v365
  %368 = vrot.lane.b32.xlu0 %v366, 64
  %v369 = vpop.permute.xlu0 %368
  %v371 = vadd.f32 %v264, %v369
  %373 = vrot.lane.b32.xlu0 %v371, 64
  %v374 = vpop.permute.xlu0 %373
  %376 = vst.msk [vmem:[%s6] sm:$0xf] %vm342, %v374
  // Predicated region
  $region26: #{_lambda_.9} parent=0 // pred_check
    _
  $region27: #{_lambda_.9} parent=0 // pred_check_branch
    %378 = sbr.rel (0) target = $region29
  $region28: #{_lambda_.9} parent=0 // pred_region
    _
  $region29: #{_lambda_.9} parent=0 // pred_fallthru
    _
  // Predicated region
  $region30: #{_lambda_.9} parent=0 // pred_check
    _
  $region31: #{_lambda_.9} parent=0 // pred_check_branch
    %380 = sbr.rel (0) target = $region33
  $region32: #{_lambda_.9} parent=0 // pred_region
    _
  $region33: #{_lambda_.9} parent=0 // pred_fallthru
    _

// kernel: _lambda_.8
$region0: #{_lambda_.8}
  #allocation0 [shape = 'u32[]', space=smem, size = 0x4, offset = 0x4, fixed_abs, tag = 'smem constant byte address 0x4 - core index']
  #allocation1 [shape = 'u32[144,128]{1,0:T(1,128)}', space=vmem, size = 0x12000, scoped, tag = 'internal scratch']
  %s0 = inlined_call_operand.vmem [shape: f32[8,32], index: 0, kind: input, shape index: {}]
  %s1 = inlined_call_operand.vmem [shape: bf16[8,8], index: 1, kind: input, shape index: {}]
  %s2 = inlined_call_operand.vmem [shape: bf16[32,32], index: 2, kind: input, shape index: {}]
  %s3 = inlined_call_operand.vmem [shape: bf16[32,32], index: 3, kind: input, shape index: {}]
  %s4 = inlined_call_operand.vmem [shape: bf16[32,32], index: 4, kind: input, shape index: {}]
  %s5 = inlined_call_operand.vmem [shape: f32[8,32], index: 5, kind: output, shape index: {}]
  %s6 = sld [smem:[#allocation0]]
  $region30: #{_lambda_.8} parent=0
    _
  %s8 = ssub.s32 1, %s6
  %s9 = scalar_select 0, %s8, %s6
  // Predicated region
  $region2: #{_lambda_.8} parent=0 // pred_check
    _
  $region3: #{_lambda_.8} parent=0 // pred_check_branch
    %11 = sbr.rel (0) target = $region5
  $region4: #{_lambda_.8} parent=0 // pred_region
    _
  $region5: #{_lambda_.8} parent=0 // pred_fallthru
    _
  // Predicated region
  $region6: #{_lambda_.8} parent=0 // pred_check
    _
  $region7: #{_lambda_.8} parent=0 // pred_check_branch
    %13 = sbr.rel (0) target = $region9
  $region8: #{_lambda_.8} parent=0 // pred_region
    _
  $region9: #{_lambda_.8} parent=0 // pred_fallthru
    _
  // Predicated region
  $region10: #{_lambda_.8} parent=0 // pred_check
    _
  $region11: #{_lambda_.8} parent=0 // pred_check_branch
    %15 = sbr.rel (0) target = $region13
  $region12: #{_lambda_.8} parent=0 // pred_region
    _
  $region13: #{_lambda_.8} parent=0 // pred_fallthru
    _
  // Predicated region
  $region14: #{_lambda_.8} parent=0 // pred_check
    _
  $region15: #{_lambda_.8} parent=0 // pred_check_branch
    %17 = sbr.rel (0) target = $region17
  $region16: #{_lambda_.8} parent=0 // pred_region
    _
  $region17: #{_lambda_.8} parent=0 // pred_fallthru
    _
  // Predicated region
  $region18: #{_lambda_.8} parent=0 // pred_check
    _
  $region19: #{_lambda_.8} parent=0 // pred_check_branch
    %19 = sbr.rel (0) target = $region21
  $region20: #{_lambda_.8} parent=0 // pred_region
    _
  $region21: #{_lambda_.8} parent=0 // pred_fallthru
    _
  %v21 = vld [vmem:[%s0] sm:$0xff]
  %v22 = vld [vmem:[%s1] sm:$0xf]
  %v23 = vpack.c.bf16 %v21, %v21
  %vm24 = vcmask 64512
  %v26 = vsel %vm24, %v22, 0
  %vm28 = vcmask 1043456
  %v30 = vsel %vm28, %v23, 0
  %32 = vmatprep.subr.bf16.mxu0 0
  %33 = vmatpush1.bf16.msra.mxu0 0
  %34 = vmatprep.subr.bf16.mxu0 0
  %35 = vmatpush1.bf16.msra.mxu0 0
  %36 = vmatprep.subr.bf16.mxu0 0
  %37 = vmatpush1.bf16.msra.mxu0 0
  %38 = vmatprep.subr.bf16.mxu0 0
  %39 = vmatpush1.bf16.msra.mxu0 0
  %40 = vmatprep.subr.bf16.mxu0 0
  %41 = vmatpush1.bf16.msra.mxu0 0
  %42 = vmatprep.subr.bf16.mxu0 0
  %43 = vmatpush1.bf16.msra.mxu0 0
  %44 = vmatprep.subr.bf16.mxu0 0
  %45 = vmatpush1.bf16.msra.mxu0 0
  %46 = vmatprep.subr.bf16.mxu0 0
  %47 = vmatpush1.bf16.msra.mxu0 %v30
  %48 = vmatprep.subr.bf16.mxu0 0
  %49 = vmatpush2.bf16.msra.mxu0 0
  %50 = vmatprep.subr.bf16.mxu0 0
  %51 = vmatpush2.bf16.msra.mxu0 0
  %52 = vmatprep.subr.bf16.mxu0 0
  %53 = vmatpush2.bf16.msra.mxu0 0
  %54 = vmatprep.subr.bf16.mxu0 0
  %55 = vmatpush2.bf16.msra.mxu0 0
  %56 = vmatprep.subr.bf16.mxu0 0
  %57 = vmatpush2.bf16.msra.mxu0 0
  %58 = vmatprep.subr.bf16.mxu0 0
  %59 = vmatpush2.bf16.msra.mxu0 0
  %60 = vmatprep.subr.bf16.mxu0 0
  %61 = vmatpush2.bf16.msra.mxu0 0
  %62 = vmatprep.subr.bf16.mxu0 0
  %63 = vmatpush2.bf16.msra.mxu0 0
  %64 = vmatprep.mubr.bf16.mxu0 0
  %65 = vmatmul.mubr.bf16.gmra.mxu0 %v26
  %v66 = vpop.f32.mrf.mxu0
  %v67 = vadd.f32 0.0, %v66
  %v68 = vpop.f32.mrf.mxu0
  %v69 = vpop.f32.mrf.mxu0
  %v70 = vpop.f32.mrf.mxu0
  %71 = vdwg.mxu0
  %v72 = vld [vmem:[%s2] sm:$0xf]
  %v73 = vld [vmem:[%s2 + $0x4] sm:$0xf]
  %v74 = vld [vmem:[%s2 + $0x8] sm:$0xf]
  %v75 = vld [vmem:[%s2 + $0xc] sm:$0xf]
  %v76 = vld [vmem:[%s3] sm:$0xf]
  %v77 = vld [vmem:[%s3 + $0x4] sm:$0xf]
  %v78 = vld [vmem:[%s3 + $0x8] sm:$0xf]
  %v79 = vld [vmem:[%s3 + $0xc] sm:$0xf]
  %v80 = vpack.c.bf16 %v67, %v67
  %v85 = vunpack.c.l.b16 %v76
  %v86 = vunpack.c.l.b16 %v77
  %v87 = vunpack.c.l.b16 %v78
  %v88 = vunpack.c.l.b16 %v79
  %v89 = vpack.c.b16 %v86, %v85
  %v90 = vpack.c.b16 %v88, %v87
  %vm93 = vcmask 261120
  %v95 = vsel %vm93, %v80, 0
  %97 = vmatprep.subr.bf16.mxu0 0
  %98 = vmatpush1.bf16.msra.mxu0 0
  %99 = vmatprep.subr.bf16.mxu0 0
  %100 = vmatpush1.bf16.msra.mxu0 0
  %101 = vmatprep.subr.bf16.mxu0 0
  %102 = vmatpush1.bf16.msra.mxu0 0
  %103 = vmatprep.subr.bf16.mxu0 0
  %104 = vmatpush1.bf16.msra.mxu0 0
  %105 = vmatprep.subr.bf16.mxu0 0
  %106 = vmatpush1.bf16.msra.mxu0 0
  %107 = vmatprep.subr.bf16.mxu0 0
  %108 = vmatpush1.bf16.msra.mxu0 0
  %109 = vmatprep.subr.bf16.mxu0 0
  %110 = vmatpush1.bf16.msra.mxu0 %v90
  %111 = vmatprep.subr.bf16.mxu0 0
  %112 = vmatpush1.bf16.msra.mxu0 %v89
  %113 = vmatprep.subr.bf16.mxu0 0
  %114 = vmatpush2.bf16.msra.mxu0 0
  %115 = vmatprep.subr.bf16.mxu0 0
  %116 = vmatpush2.bf16.msra.mxu0 0
  %117 = vmatprep.subr.bf16.mxu0 0
  %118 = vmatpush2.bf16.msra.mxu0 0
  %119 = vmatprep.subr.bf16.mxu0 0
  %120 = vmatpush2.bf16.msra.mxu0 0
  %121 = vmatprep.subr.bf16.mxu0 0
  %122 = vmatpush2.bf16.msra.mxu0 0
  %123 = vmatprep.subr.bf16.mxu0 0
  %124 = vmatpush2.bf16.msra.mxu0 0
  %125 = vmatprep.subr.bf16.mxu0 0
  %126 = vmatpush2.bf16.msra.mxu0 0
  %127 = vmatprep.subr.bf16.mxu0 0
  %128 = vmatpush2.bf16.msra.mxu0 0
  %129 = vmatprep.mubr.bf16.mxu0 0
  %130 = vmatmul.mubr.bf16.gmra.mxu0 %v95
  %v131 = vpop.f32.mrf.mxu0
  %v132 = vadd.f32 0.0, %v131
  %v133 = vpop.f32.mrf.mxu0
  %v134 = vpop.f32.mrf.mxu0
  %v135 = vpop.f32.mrf.mxu0
  %136 = vdwg.mxu0
  %v141 = vunpack.c.l.b16 %v72
  %v142 = vunpack.c.l.b16 %v73
  %v143 = vunpack.c.l.b16 %v74
  %v144 = vunpack.c.l.b16 %v75
  %v145 = vpack.c.b16 %v142, %v141
  %v146 = vpack.c.b16 %v144, %v143
  %v149 = vsel %vm93, %v23, 0
  %151 = vmatprep.subr.bf16.mxu0 0
  %152 = vmatpush1.bf16.msra.mxu0 0
  %153 = vmatprep.subr.bf16.mxu0 0
  %154 = vmatpush1.bf16.msra.mxu0 0
  %155 = vmatprep.subr.bf16.mxu0 0
  %156 = vmatpush1.bf16.msra.mxu0 0
  %157 = vmatprep.subr.bf16.mxu0 0
  %158 = vmatpush1.bf16.msra.mxu0 0
  %159 = vmatprep.subr.bf16.mxu0 0
  %160 = vmatpush1.bf16.msra.mxu0 0
  %161 = vmatprep.subr.bf16.mxu0 0
  %162 = vmatpush1.bf16.msra.mxu0 0
  %163 = vmatprep.subr.bf16.mxu0 0
  %164 = vmatpush1.bf16.msra.mxu0 %v146
  %165 = vmatprep.subr.bf16.mxu0 0
  %166 = vmatpush1.bf16.msra.mxu0 %v145
  %167 = vmatprep.subr.bf16.mxu0 0
  %168 = vmatpush2.bf16.msra.mxu0 0
  %169 = vmatprep.subr.bf16.mxu0 0
  %170 = vmatpush2.bf16.msra.mxu0 0
  %171 = vmatprep.subr.bf16.mxu0 0
  %172 = vmatpush2.bf16.msra.mxu0 0
  %173 = vmatprep.subr.bf16.mxu0 0
  %174 = vmatpush2.bf16.msra.mxu0 0
  %175 = vmatprep.subr.bf16.mxu0 0
  %176 = vmatpush2.bf16.msra.mxu0 0
  %177 = vmatprep.subr.bf16.mxu0 0
  %178 = vmatpush2.bf16.msra.mxu0 0
  %179 = vmatprep.subr.bf16.mxu0 0
  %180 = vmatpush2.bf16.msra.mxu0 0
  %181 = vmatprep.subr.bf16.mxu0 0
  %182 = vmatpush2.bf16.msra.mxu0 0
  %183 = vmatprep.mubr.bf16.mxu0 0
  %184 = vmatmul.mubr.bf16.gmra.mxu0 %v149
  %v185 = vpop.f32.mrf.mxu0
  %v186 = vadd.f32 %v132, %v185
  %v187 = vpop.f32.mrf.mxu0
  %v188 = vpop.f32.mrf.mxu0
  %v189 = vpop.f32.mrf.mxu0
  %190 = vdwg.mxu0
  %v191 = vsel %vm93, %v186, 0.0
  %v192 = vrot.slane %v191, 4
  %v193 = vadd.f32 %v191, %v192
  %v194 = vrot.slane %v193, 2
  %v195 = vadd.f32 %v193, %v194
  %v196 = vrot.slane %v195, 1
  %v197 = vadd.f32 %v195, %v196
  %v198 = vrcp.pop 8.0
  %v199 = vmul.f32 %v197, %v198
  %v200 = vsub.f32 %v186, %v199
  %v201 = vmul.f32 %v200, %v200
  %v202 = vsel %vm93, %v201, 0.0
  %v203 = vrot.slane %v202, 4
  %v204 = vadd.f32 %v202, %v203
  %v205 = vrot.slane %v204, 2
  %v206 = vadd.f32 %v204, %v205
  %v207 = vrot.slane %v206, 1
  %v208 = vadd.f32 %v206, %v207
  %v209 = vmul.f32 %v208, %v198
  %v210 = vadd.f32 %v209, 1e-05
  %v211 = vrsqrt.pop %v210
  %v212 = vmul.f32 %v200, %v211
  %vm213 = vcmp.ge.f32.partialorder %v212, 0.0
  %v214 = vmul.f32 %v212, 0.01
  %v215 = vsel %vm213, %v212, %v214
  %v216 = vld [vmem:[%s4] sm:$0xf]
  %v217 = vld [vmem:[%s4 + $0x4] sm:$0xf]
  %v218 = vld [vmem:[%s4 + $0x8] sm:$0xf]
  %v219 = vld [vmem:[%s4 + $0xc] sm:$0xf]
  %v220 = vpack.c.bf16 %v215, %v215
  %v225 = vunpack.c.l.b16 %v216
  %v226 = vunpack.c.l.b16 %v217
  %v227 = vunpack.c.l.b16 %v218
  %v228 = vunpack.c.l.b16 %v219
  %v229 = vpack.c.b16 %v226, %v225
  %v230 = vpack.c.b16 %v228, %v227
  %v234 = vsel %vm93, %v220, 0
  %236 = vmatprep.subr.bf16.mxu0 0
  %237 = vmatpush1.bf16.msra.mxu0 0
  %238 = vmatprep.subr.bf16.mxu0 0
  %239 = vmatpush1.bf16.msra.mxu0 0
  %240 = vmatprep.subr.bf16.mxu0 0
  %241 = vmatpush1.bf16.msra.mxu0 0
  %242 = vmatprep.subr.bf16.mxu0 0
  %243 = vmatpush1.bf16.msra.mxu0 0
  %244 = vmatprep.subr.bf16.mxu0 0
  %245 = vmatpush1.bf16.msra.mxu0 0
  %246 = vmatprep.subr.bf16.mxu0 0
  %247 = vmatpush1.bf16.msra.mxu0 0
  %248 = vmatprep.subr.bf16.mxu0 0
  %249 = vmatpush1.bf16.msra.mxu0 %v230
  %250 = vmatprep.subr.bf16.mxu0 0
  %251 = vmatpush1.bf16.msra.mxu0 %v229
  %252 = vmatprep.subr.bf16.mxu0 0
  %253 = vmatpush2.bf16.msra.mxu0 0
  %254 = vmatprep.subr.bf16.mxu0 0
  %255 = vmatpush2.bf16.msra.mxu0 0
  %256 = vmatprep.subr.bf16.mxu0 0
  %257 = vmatpush2.bf16.msra.mxu0 0
  %258 = vmatprep.subr.bf16.mxu0 0
  %259 = vmatpush2.bf16.msra.mxu0 0
  %260 = vmatprep.subr.bf16.mxu0 0
  %261 = vmatpush2.bf16.msra.mxu0 0
  %262 = vmatprep.subr.bf16.mxu0 0
  %263 = vmatpush2.bf16.msra.mxu0 0
  %264 = vmatprep.subr.bf16.mxu0 0
  %265 = vmatpush2.bf16.msra.mxu0 0
  %266 = vmatprep.subr.bf16.mxu0 0
  %267 = vmatpush2.bf16.msra.mxu0 0
  %268 = vmatprep.mubr.bf16.mxu0 0
  %269 = vmatmul.mubr.bf16.gmra.mxu0 %v234
  %v270 = vpop.f32.mrf.mxu0
  %v271 = vadd.f32 0.0, %v270
  %v272 = vpop.f32.mrf.mxu0
  %v273 = vpop.f32.mrf.mxu0
  %v274 = vpop.f32.mrf.mxu0
  %275 = vdwg.mxu0
  %v276 = vsel %vm93, %v271, 0.0
  %v277 = vrot.slane %v276, 4
  %v278 = vadd.f32 %v276, %v277
  %v279 = vrot.slane %v278, 2
  %v280 = vadd.f32 %v278, %v279
  %v281 = vrot.slane %v280, 1
  %v282 = vadd.f32 %v280, %v281
  %v283 = vmul.f32 %v282, %v198
  %v284 = vsub.f32 %v271, %v283
  %v285 = vmul.f32 %v284, %v284
  %v286 = vsel %vm93, %v285, 0.0
  %v287 = vrot.slane %v286, 4
  %v288 = vadd.f32 %v286, %v287
  %v289 = vrot.slane %v288, 2
  %v290 = vadd.f32 %v288, %v289
  %v291 = vrot.slane %v290, 1
  %v292 = vadd.f32 %v290, %v291
  %v293 = vmul.f32 %v292, %v198
  %v294 = vadd.f32 %v293, 1e-05
  %v295 = vrsqrt.pop %v294
  %v296 = vmul.f32 %v284, %v295
  %vm297 = vcmp.ge.f32.partialorder %v296, 0.0
  %v298 = vmul.f32 %v296, 0.01
  %v299 = vsel %vm297, %v296, %v298
  %v300 = vadd.f32 %v21, %v299
  %301 = vst.msk [vmem:[%s5] sm:$0xff] %vm93, %v300
  // Predicated region
  $region22: #{_lambda_.8} parent=0 // pred_check
    _
  $region23: #{_lambda_.8} parent=0 // pred_check_branch
    %303 = sbr.rel (0) target = $region25
  $region24: #{_lambda_.8} parent=0 // pred_region
    _
  $region25: #{_lambda_.8} parent=0 // pred_fallthru
    _
  // Predicated region
  $region26: #{_lambda_.8} parent=0 // pred_check
    _
  $region27: #{_lambda_.8} parent=0 // pred_check_branch
    %305 = sbr.rel (0) target = $region29
  $region28: #{_lambda_.8} parent=0 // pred_region
    _
  $region29: #{_lambda_.8} parent=0 // pred_fallthru
    _

// kernel: _lambda_.6
$region0: #{_lambda_.6}
  #allocation0 [shape = 'u32[]', space=smem, size = 0x4, offset = 0x4, fixed_abs, tag = 'smem constant byte address 0x4 - core index']
  #allocation1 [shape = 'u32[144,128]{1,0:T(1,128)}', space=vmem, size = 0x12000, scoped, tag = 'internal scratch']
  %s0 = inlined_call_operand.vmem [shape: f32[16,8], index: 0, kind: input, shape index: {}]
  %s1 = inlined_call_operand.vmem [shape: bf16[8,32], index: 1, kind: input, shape index: {}]
  %s2 = inlined_call_operand.vmem [shape: bf16[32,32], index: 2, kind: input, shape index: {}]
  %s3 = inlined_call_operand.vmem [shape: f32[16,32], index: 3, kind: output, shape index: {}]
  %s4 = sld [smem:[#allocation0]]
  $region22: #{_lambda_.6} parent=0
    _
  %s6 = ssub.s32 1, %s4
  %s7 = scalar_select 0, %s6, %s4
  // Predicated region
  $region2: #{_lambda_.6} parent=0 // pred_check
    _
  $region3: #{_lambda_.6} parent=0 // pred_check_branch
    %9 = sbr.rel (0) target = $region5
  $region4: #{_lambda_.6} parent=0 // pred_region
    _
  $region5: #{_lambda_.6} parent=0 // pred_fallthru
    _
  // Predicated region
  $region6: #{_lambda_.6} parent=0 // pred_check
    _
  $region7: #{_lambda_.6} parent=0 // pred_check_branch
    %11 = sbr.rel (0) target = $region9
  $region8: #{_lambda_.6} parent=0 // pred_region
    _
  $region9: #{_lambda_.6} parent=0 // pred_fallthru
    _
  // Predicated region
  $region10: #{_lambda_.6} parent=0 // pred_check
    _
  $region11: #{_lambda_.6} parent=0 // pred_check_branch
    %13 = sbr.rel (0) target = $region13
  $region12: #{_lambda_.6} parent=0 // pred_region
    _
  $region13: #{_lambda_.6} parent=0 // pred_fallthru
    _
  %v15 = vld [vmem:[%s0] sm:$0xff]
  %v16 = vld [vmem:[%s0 + $0x8] sm:$0xff]
  %v17 = vld [vmem:[%s1] sm:$0xf]
  %v18 = vpack.c.bf16 %v16, %v15
  %vm19 = vcmask 64512
  %v21 = vsel %vm19, %v18, 0
  %vm23 = vcmask 1043456
  %v25 = vsel %vm23, %v17, 0
  %27 = vmatprep.subr.bf16.mxu0 0
  %28 = vmatpush1.bf16.msra.mxu0 0
  %29 = vmatprep.subr.bf16.mxu0 0
  %30 = vmatpush1.bf16.msra.mxu0 0
  %31 = vmatprep.subr.bf16.mxu0 0
  %32 = vmatpush1.bf16.msra.mxu0 0
  %33 = vmatprep.subr.bf16.mxu0 0
  %34 = vmatpush1.bf16.msra.mxu0 0
  %35 = vmatprep.subr.bf16.mxu0 0
  %36 = vmatpush1.bf16.msra.mxu0 0
  %37 = vmatprep.subr.bf16.mxu0 0
  %38 = vmatpush1.bf16.msra.mxu0 0
  %39 = vmatprep.subr.bf16.mxu0 0
  %40 = vmatpush1.bf16.msra.mxu0 0
  %41 = vmatprep.subr.bf16.mxu0 0
  %42 = vmatpush1.bf16.msra.mxu0 %v25
  %43 = vmatprep.subr.bf16.mxu0 0
  %44 = vmatpush2.bf16.msra.mxu0 0
  %45 = vmatprep.subr.bf16.mxu0 0
  %46 = vmatpush2.bf16.msra.mxu0 0
  %47 = vmatprep.subr.bf16.mxu0 0
  %48 = vmatpush2.bf16.msra.mxu0 0
  %49 = vmatprep.subr.bf16.mxu0 0
  %50 = vmatpush2.bf16.msra.mxu0 0
  %51 = vmatprep.subr.bf16.mxu0 0
  %52 = vmatpush2.bf16.msra.mxu0 0
  %53 = vmatprep.subr.bf16.mxu0 0
  %54 = vmatpush2.bf16.msra.mxu0 0
  %55 = vmatprep.subr.bf16.mxu0 0
  %56 = vmatpush2.bf16.msra.mxu0 0
  %57 = vmatprep.subr.bf16.mxu0 0
  %58 = vmatpush2.bf16.msra.mxu0 0
  %59 = vmatprep.mubr.bf16.mxu0 0
  %60 = vmatmul.mubr.bf16.gmra.mxu0 %v21
  %v61 = vpop.f32.mrf.mxu0
  %v62 = vadd.f32 0.0, %v61
  %v63 = vpop.f32.mrf.mxu0
  %v64 = vpop.f32.mrf.mxu0
  %v65 = vadd.f32 0.0, %v64
  %v66 = vpop.f32.mrf.mxu0
  %67 = vdwg.mxu0
  %vm68 = vcmask 261120
  %v69 = vsel %vm68, %v62, 0.0
  %v70 = vsel %vm68, %v65, 0.0
  %v71 = vadd.f32 %v69, %v70
  %v72 = vrot.slane %v71, 4
  %v73 = vadd.f32 %v71, %v72
  %v74 = vrot.slane %v73, 2
  %v75 = vadd.f32 %v73, %v74
  %v76 = vrot.slane %v75, 1
  %v77 = vadd.f32 %v75, %v76
  %v78 = vrcp.pop 16.0
  %v79 = vmul.f32 %v77, %v78
  %v80 = vsub.f32 %v62, %v79
  %v81 = vsub.f32 %v65, %v79
  %v82 = vmul.f32 %v80, %v80
  %v83 = vmul.f32 %v81, %v81
  %v84 = vsel %vm68, %v82, 0.0
  %v85 = vsel %vm68, %v83, 0.0
  %v86 = vadd.f32 %v84, %v85
  %v87 = vrot.slane %v86, 4
  %v88 = vadd.f32 %v86, %v87
  %v89 = vrot.slane %v88, 2
  %v90 = vadd.f32 %v88, %v89
  %v91 = vrot.slane %v90, 1
  %v92 = vadd.f32 %v90, %v91
  %v93 = vmul.f32 %v92, %v78
  %v94 = vadd.f32 %v93, 1e-05
  %v95 = vrsqrt.pop %v94
  %v96 = vmul.f32 %v80, %v95
  %v97 = vmul.f32 %v81, %v95
  %vm98 = vcmp.ge.f32.partialorder %v96, 0.0
  %vm99 = vcmp.ge.f32.partialorder %v97, 0.0
  %v100 = vmul.f32 %v96, 0.01
  %v101 = vmul.f32 %v97, 0.01
  %v102 = vsel %vm98, %v96, %v100
  %v103 = vsel %vm99, %v97, %v101
  %v104 = vld [vmem:[%s2] sm:$0xf]
  %v105 = vld [vmem:[%s2 + $0x4] sm:$0xf]
  %v106 = vld [vmem:[%s2 + $0x8] sm:$0xf]
  %v107 = vld [vmem:[%s2 + $0xc] sm:$0xf]
  %v108 = vpack.c.bf16 %v103, %v102
  %v113 = vunpack.c.l.b16 %v104
  %v114 = vunpack.c.l.b16 %v105
  %v115 = vunpack.c.l.b16 %v106
  %v116 = vunpack.c.l.b16 %v107
  %v117 = vpack.c.b16 %v114, %v113
  %v118 = vpack.c.b16 %v116, %v115
  %v122 = vsel %vm68, %v108, 0
  %124 = vmatprep.subr.bf16.mxu0 0
  %125 = vmatpush1.bf16.msra.mxu0 0
  %126 = vmatprep.subr.bf16.mxu0 0
  %127 = vmatpush1.bf16.msra.mxu0 0
  %128 = vmatprep.subr.bf16.mxu0 0
  %129 = vmatpush1.bf16.msra.mxu0 0
  %130 = vmatprep.subr.bf16.mxu0 0
  %131 = vmatpush1.bf16.msra.mxu0 0
  %132 = vmatprep.subr.bf16.mxu0 0
  %133 = vmatpush1.bf16.msra.mxu0 0
  %134 = vmatprep.subr.bf16.mxu0 0
  %135 = vmatpush1.bf16.msra.mxu0 0
  %136 = vmatprep.subr.bf16.mxu0 0
  %137 = vmatpush1.bf16.msra.mxu0 %v118
  %138 = vmatprep.subr.bf16.mxu0 0
  %139 = vmatpush1.bf16.msra.mxu0 %v117
  %140 = vmatprep.subr.bf16.mxu0 0
  %141 = vmatpush2.bf16.msra.mxu0 0
  %142 = vmatprep.subr.bf16.mxu0 0
  %143 = vmatpush2.bf16.msra.mxu0 0
  %144 = vmatprep.subr.bf16.mxu0 0
  %145 = vmatpush2.bf16.msra.mxu0 0
  %146 = vmatprep.subr.bf16.mxu0 0
  %147 = vmatpush2.bf16.msra.mxu0 0
  %148 = vmatprep.subr.bf16.mxu0 0
  %149 = vmatpush2.bf16.msra.mxu0 0
  %150 = vmatprep.subr.bf16.mxu0 0
  %151 = vmatpush2.bf16.msra.mxu0 0
  %152 = vmatprep.subr.bf16.mxu0 0
  %153 = vmatpush2.bf16.msra.mxu0 0
  %154 = vmatprep.subr.bf16.mxu0 0
  %155 = vmatpush2.bf16.msra.mxu0 0
  %156 = vmatprep.mubr.bf16.mxu0 0
  %157 = vmatmul.mubr.bf16.gmra.mxu0 %v122
  %v158 = vpop.f32.mrf.mxu0
  %v159 = vadd.f32 0.0, %v158
  %v160 = vpop.f32.mrf.mxu0
  %v161 = vpop.f32.mrf.mxu0
  %v162 = vadd.f32 0.0, %v161
  %v163 = vpop.f32.mrf.mxu0
  %164 = vdwg.mxu0
  %v165 = vsel %vm68, %v159, 0.0
  %v166 = vsel %vm68, %v162, 0.0
  %v167 = vadd.f32 %v165, %v166
  %v168 = vrot.slane %v167, 4
  %v169 = vadd.f32 %v167, %v168
  %v170 = vrot.slane %v169, 2
  %v171 = vadd.f32 %v169, %v170
  %v172 = vrot.slane %v171, 1
  %v173 = vadd.f32 %v171, %v172
  %v174 = vmul.f32 %v173, %v78
  %v175 = vsub.f32 %v159, %v174
  %v176 = vsub.f32 %v162, %v174
  %v177 = vmul.f32 %v175, %v175
  %v178 = vmul.f32 %v176, %v176
  %v179 = vsel %vm68, %v177, 0.0
  %v180 = vsel %vm68, %v178, 0.0
  %v181 = vadd.f32 %v179, %v180
  %v182 = vrot.slane %v181, 4
  %v183 = vadd.f32 %v181, %v182
  %v184 = vrot.slane %v183, 2
  %v185 = vadd.f32 %v183, %v184
  %v186 = vrot.slane %v185, 1
  %v187 = vadd.f32 %v185, %v186
  %v188 = vmul.f32 %v187, %v78
  %v189 = vadd.f32 %v188, 1e-05
  %v190 = vrsqrt.pop %v189
  %v191 = vmul.f32 %v175, %v190
  %v192 = vmul.f32 %v176, %v190
  %vm193 = vcmp.ge.f32.partialorder %v191, 0.0
  %vm194 = vcmp.ge.f32.partialorder %v192, 0.0
  %v195 = vmul.f32 %v191, 0.01
  %v196 = vmul.f32 %v192, 0.01
  %v197 = vsel %vm193, %v191, %v195
  %v198 = vsel %vm194, %v192, %v196
  %199 = vst.msk [vmem:[%s3] sm:$0xff] %vm68, %v197
  %200 = vst.msk [vmem:[%s3 + $0x8] sm:$0xff] %vm68, %v198
  // Predicated region
  $region14: #{_lambda_.6} parent=0 // pred_check
    _
  $region15: #{_lambda_.6} parent=0 // pred_check_branch
    %202 = sbr.rel (0) target = $region17
  $region16: #{_lambda_.6} parent=0 // pred_region
    _
  $region17: #{_lambda_.6} parent=0 // pred_fallthru
    _
  // Predicated region
  $region18: #{_lambda_.6} parent=0 // pred_check
    _
  $region19: #{_lambda_.6} parent=0 // pred_check_branch
    %204 = sbr.rel (0) target = $region21
  $region20: #{_lambda_.6} parent=0 // pred_region
    _
  $region21: #{_lambda_.6} parent=0 // pred_fallthru
    _

// kernel: _lambda_.10
$region0: #{_lambda_.10}
  #allocation0 [shape = 'u32[]', space=smem, size = 0x4, offset = 0x4, fixed_abs, tag = 'smem constant byte address 0x4 - core index']
  #allocation1 [shape = 'u32[144,128]{1,0:T(1,128)}', space=vmem, size = 0x12000, scoped, tag = 'internal scratch']
  %s0 = inlined_call_operand.vmem [shape: f32[4,64], index: 0, kind: input, shape index: {}]
  %s1 = inlined_call_operand.vmem [shape: bf16[4,4], index: 1, kind: input, shape index: {}]
  %s2 = inlined_call_operand.vmem [shape: bf16[64,64], index: 2, kind: input, shape index: {}]
  %s3 = inlined_call_operand.vmem [shape: bf16[64,64], index: 3, kind: input, shape index: {}]
  %s4 = inlined_call_operand.vmem [shape: bf16[64,64], index: 4, kind: input, shape index: {}]
  %s5 = inlined_call_operand.vmem [shape: f32[4,64], index: 5, kind: output, shape index: {}]
  %s6 = sld [smem:[#allocation0]]
  $region30: #{_lambda_.10} parent=0
    _
  %s8 = ssub.s32 1, %s6
  %s9 = scalar_select 0, %s8, %s6
  // Predicated region
  $region2: #{_lambda_.10} parent=0 // pred_check
    _
  $region3: #{_lambda_.10} parent=0 // pred_check_branch
    %11 = sbr.rel (0) target = $region5
  $region4: #{_lambda_.10} parent=0 // pred_region
    _
  $region5: #{_lambda_.10} parent=0 // pred_fallthru
    _
  // Predicated region
  $region6: #{_lambda_.10} parent=0 // pred_check
    _
  $region7: #{_lambda_.10} parent=0 // pred_check_branch
    %13 = sbr.rel (0) target = $region9
  $region8: #{_lambda_.10} parent=0 // pred_region
    _
  $region9: #{_lambda_.10} parent=0 // pred_fallthru
    _
  // Predicated region
  $region10: #{_lambda_.10} parent=0 // pred_check
    _
  $region11: #{_lambda_.10} parent=0 // pred_check_branch
    %15 = sbr.rel (0) target = $region13
  $region12: #{_lambda_.10} parent=0 // pred_region
    _
  $region13: #{_lambda_.10} parent=0 // pred_fallthru
    _
  // Predicated region
  $region14: #{_lambda_.10} parent=0 // pred_check
    _
  $region15: #{_lambda_.10} parent=0 // pred_check_branch
    %17 = sbr.rel (0) target = $region17
  $region16: #{_lambda_.10} parent=0 // pred_region
    _
  $region17: #{_lambda_.10} parent=0 // pred_fallthru
    _
  // Predicated region
  $region18: #{_lambda_.10} parent=0 // pred_check
    _
  $region19: #{_lambda_.10} parent=0 // pred_check_branch
    %19 = sbr.rel (0) target = $region21
  $region20: #{_lambda_.10} parent=0 // pred_region
    _
  $region21: #{_lambda_.10} parent=0 // pred_fallthru
    _
  %v21 = vld [vmem:[%s0] sm:$0xf]
  %v22 = vld [vmem:[%s1] sm:$0x3]
  %v23 = vpack.c.bf16 %v21, %v21
  %vm24 = vcmask 31744
  %v26 = vsel %vm24, %v22, 0
  %vm28 = vcmask 1041408
  %v30 = vsel %vm28, %v23, 0
  %32 = vmatprep.subr.bf16.mxu0 0
  %33 = vmatpush1.bf16.msra.mxu0 0
  %34 = vmatprep.subr.bf16.mxu0 0
  %35 = vmatpush1.bf16.msra.mxu0 0
  %36 = vmatprep.subr.bf16.mxu0 0
  %37 = vmatpush1.bf16.msra.mxu0 0
  %38 = vmatprep.subr.bf16.mxu0 0
  %39 = vmatpush1.bf16.msra.mxu0 0
  %40 = vmatprep.subr.bf16.mxu0 0
  %41 = vmatpush1.bf16.msra.mxu0 0
  %42 = vmatprep.subr.bf16.mxu0 0
  %43 = vmatpush1.bf16.msra.mxu0 0
  %44 = vmatprep.subr.bf16.mxu0 0
  %45 = vmatpush1.bf16.msra.mxu0 0
  %46 = vmatprep.subr.bf16.mxu0 0
  %47 = vmatpush1.bf16.msra.mxu0 %v30
  %48 = vmatprep.subr.bf16.mxu0 0
  %49 = vmatpush2.bf16.msra.mxu0 0
  %50 = vmatprep.subr.bf16.mxu0 0
  %51 = vmatpush2.bf16.msra.mxu0 0
  %52 = vmatprep.subr.bf16.mxu0 0
  %53 = vmatpush2.bf16.msra.mxu0 0
  %54 = vmatprep.subr.bf16.mxu0 0
  %55 = vmatpush2.bf16.msra.mxu0 0
  %56 = vmatprep.subr.bf16.mxu0 0
  %57 = vmatpush2.bf16.msra.mxu0 0
  %58 = vmatprep.subr.bf16.mxu0 0
  %59 = vmatpush2.bf16.msra.mxu0 0
  %60 = vmatprep.subr.bf16.mxu0 0
  %61 = vmatpush2.bf16.msra.mxu0 0
  %62 = vmatprep.subr.bf16.mxu0 0
  %63 = vmatpush2.bf16.msra.mxu0 0
  %64 = vmatprep.mubr.bf16.mxu0 0
  %65 = vmatmul.mubr.bf16.gmra.mxu0 %v26
  %v66 = vpop.f32.mrf.mxu0
  %v67 = vadd.f32 0.0, %v66
  %v68 = vpop.f32.mrf.mxu0
  %v69 = vpop.f32.mrf.mxu0
  %v70 = vpop.f32.mrf.mxu0
  %71 = vdwg.mxu0
  %v72 = vld [vmem:[%s2] sm:$0xf]
  %v73 = vld [vmem:[%s2 + $0x4] sm:$0xf]
  %v74 = vld [vmem:[%s2 + $0x8] sm:$0xf]
  %v75 = vld [vmem:[%s2 + $0xc] sm:$0xf]
  %v76 = vld [vmem:[%s2 + $0x10] sm:$0xf]
  %v77 = vld [vmem:[%s2 + $0x14] sm:$0xf]
  %v78 = vld [vmem:[%s2 + $0x18] sm:$0xf]
  %v79 = vld [vmem:[%s2 + $0x1c] sm:$0xf]
  %v80 = vld [vmem:[%s3] sm:$0xf]
  %v81 = vld [vmem:[%s3 + $0x4] sm:$0xf]
  %v82 = vld [vmem:[%s3 + $0x8] sm:$0xf]
  %v83 = vld [vmem:[%s3 + $0xc] sm:$0xf]
  %v84 = vld [vmem:[%s3 + $0x10] sm:$0xf]
  %v85 = vld [vmem:[%s3 + $0x14] sm:$0xf]
  %v86 = vld [vmem:[%s3 + $0x18] sm:$0xf]
  %v87 = vld [vmem:[%s3 + $0x1c] sm:$0xf]
  %v88 = vpack.c.bf16 %v67, %v67
  %v97 = vunpack.c.l.b16 %v80
  %v98 = vunpack.c.l.b16 %v81
  %v99 = vunpack.c.l.b16 %v82
  %v100 = vunpack.c.l.b16 %v83
  %v101 = vunpack.c.l.b16 %v84
  %v102 = vunpack.c.l.b16 %v85
  %v103 = vunpack.c.l.b16 %v86
  %v104 = vunpack.c.l.b16 %v87
  %v105 = vpack.c.b16 %v98, %v97
  %v106 = vpack.c.b16 %v100, %v99
  %v107 = vpack.c.b16 %v102, %v101
  %v108 = vpack.c.b16 %v104, %v103
  %vm113 = vcmask 523264
  %v115 = vsel %vm113, %v88, 0
  %117 = vmatprep.subr.bf16.mxu0 0
  %118 = vmatpush1.bf16.msra.mxu0 0
  %119 = vmatprep.subr.bf16.mxu0 0
  %120 = vmatpush1.bf16.msra.mxu0 0
  %121 = vmatprep.subr.bf16.mxu0 0
  %122 = vmatpush1.bf16.msra.mxu0 0
  %123 = vmatprep.subr.bf16.mxu0 0
  %124 = vmatpush1.bf16.msra.mxu0 0
  %125 = vmatprep.subr.bf16.mxu0 0
  %126 = vmatpush1.bf16.msra.mxu0 %v108
  %127 = vmatprep.subr.bf16.mxu0 0
  %128 = vmatpush1.bf16.msra.mxu0 %v107
  %129 = vmatprep.subr.bf16.mxu0 0
  %130 = vmatpush1.bf16.msra.mxu0 %v106
  %131 = vmatprep.subr.bf16.mxu0 0
  %132 = vmatpush1.bf16.msra.mxu0 %v105
  %133 = vmatprep.subr.bf16.mxu0 0
  %134 = vmatpush2.bf16.msra.mxu0 0
  %135 = vmatprep.subr.bf16.mxu0 0
  %136 = vmatpush2.bf16.msra.mxu0 0
  %137 = vmatprep.subr.bf16.mxu0 0
  %138 = vmatpush2.bf16.msra.mxu0 0
  %139 = vmatprep.subr.bf16.mxu0 0
  %140 = vmatpush2.bf16.msra.mxu0 0
  %141 = vmatprep.subr.bf16.mxu0 0
  %142 = vmatpush2.bf16.msra.mxu0 0
  %143 = vmatprep.subr.bf16.mxu0 0
  %144 = vmatpush2.bf16.msra.mxu0 0
  %145 = vmatprep.subr.bf16.mxu0 0
  %146 = vmatpush2.bf16.msra.mxu0 0
  %147 = vmatprep.subr.bf16.mxu0 0
  %148 = vmatpush2.bf16.msra.mxu0 0
  %149 = vmatprep.mubr.bf16.mxu0 0
  %150 = vmatmul.mubr.bf16.gmra.mxu0 %v115
  %v151 = vpop.f32.mrf.mxu0
  %v152 = vadd.f32 0.0, %v151
  %v153 = vpop.f32.mrf.mxu0
  %v154 = vpop.f32.mrf.mxu0
  %v155 = vpop.f32.mrf.mxu0
  %156 = vdwg.mxu0
  %v165 = vunpack.c.l.b16 %v72
  %v166 = vunpack.c.l.b16 %v73
  %v167 = vunpack.c.l.b16 %v74
  %v168 = vunpack.c.l.b16 %v75
  %v169 = vunpack.c.l.b16 %v76
  %v170 = vunpack.c.l.b16 %v77
  %v171 = vunpack.c.l.b16 %v78
  %v172 = vunpack.c.l.b16 %v79
  %v173 = vpack.c.b16 %v166, %v165
  %v174 = vpack.c.b16 %v168, %v167
  %v175 = vpack.c.b16 %v170, %v169
  %v176 = vpack.c.b16 %v172, %v171
  %v181 = vsel %vm113, %v23, 0
  %183 = vmatprep.subr.bf16.mxu0 0
  %184 = vmatpush1.bf16.msra.mxu0 0
  %185 = vmatprep.subr.bf16.mxu0 0
  %186 = vmatpush1.bf16.msra.mxu0 0
  %187 = vmatprep.subr.bf16.mxu0 0
  %188 = vmatpush1.bf16.msra.mxu0 0
  %189 = vmatprep.subr.bf16.mxu0 0
  %190 = vmatpush1.bf16.msra.mxu0 0
  %191 = vmatprep.subr.bf16.mxu0 0
  %192 = vmatpush1.bf16.msra.mxu0 %v176
  %193 = vmatprep.subr.bf16.mxu0 0
  %194 = vmatpush1.bf16.msra.mxu0 %v175
  %195 = vmatprep.subr.bf16.mxu0 0
  %196 = vmatpush1.bf16.msra.mxu0 %v174
  %197 = vmatprep.subr.bf16.mxu0 0
  %198 = vmatpush1.bf16.msra.mxu0 %v173
  %199 = vmatprep.subr.bf16.mxu0 0
  %200 = vmatpush2.bf16.msra.mxu0 0
  %201 = vmatprep.subr.bf16.mxu0 0
  %202 = vmatpush2.bf16.msra.mxu0 0
  %203 = vmatprep.subr.bf16.mxu0 0
  %204 = vmatpush2.bf16.msra.mxu0 0
  %205 = vmatprep.subr.bf16.mxu0 0
  %206 = vmatpush2.bf16.msra.mxu0 0
  %207 = vmatprep.subr.bf16.mxu0 0
  %208 = vmatpush2.bf16.msra.mxu0 0
  %209 = vmatprep.subr.bf16.mxu0 0
  %210 = vmatpush2.bf16.msra.mxu0 0
  %211 = vmatprep.subr.bf16.mxu0 0
  %212 = vmatpush2.bf16.msra.mxu0 0
  %213 = vmatprep.subr.bf16.mxu0 0
  %214 = vmatpush2.bf16.msra.mxu0 0
  %215 = vmatprep.mubr.bf16.mxu0 0
  %216 = vmatmul.mubr.bf16.gmra.mxu0 %v181
  %v217 = vpop.f32.mrf.mxu0
  %v218 = vadd.f32 %v152, %v217
  %v219 = vpop.f32.mrf.mxu0
  %v220 = vpop.f32.mrf.mxu0
  %v221 = vpop.f32.mrf.mxu0
  %222 = vdwg.mxu0
  %vm223 = vcmp.ge.f32.partialorder %v218, 0.0
  %v224 = vmul.f32 %v218, 0.01
  %v225 = vsel %vm223, %v218, %v224
  %v226 = vld [vmem:[%s4] sm:$0xf]
  %v227 = vld [vmem:[%s4 + $0x4] sm:$0xf]
  %v228 = vld [vmem:[%s4 + $0x8] sm:$0xf]
  %v229 = vld [vmem:[%s4 + $0xc] sm:$0xf]
  %v230 = vld [vmem:[%s4 + $0x10] sm:$0xf]
  %v231 = vld [vmem:[%s4 + $0x14] sm:$0xf]
  %v232 = vld [vmem:[%s4 + $0x18] sm:$0xf]
  %v233 = vld [vmem:[%s4 + $0x1c] sm:$0xf]
  %v234 = vpack.c.bf16 %v225, %v225
  %v243 = vunpack.c.l.b16 %v226
  %v244 = vunpack.c.l.b16 %v227
  %v245 = vunpack.c.l.b16 %v228
  %v246 = vunpack.c.l.b16 %v229
  %v247 = vunpack.c.l.b16 %v230
  %v248 = vunpack.c.l.b16 %v231
  %v249 = vunpack.c.l.b16 %v232
  %v250 = vunpack.c.l.b16 %v233
  %v251 = vpack.c.b16 %v244, %v243
  %v252 = vpack.c.b16 %v246, %v245
  %v253 = vpack.c.b16 %v248, %v247
  %v254 = vpack.c.b16 %v250, %v249
  %v260 = vsel %vm113, %v234, 0
  %262 = vmatprep.subr.bf16.mxu0 0
  %263 = vmatpush1.bf16.msra.mxu0 0
  %264 = vmatprep.subr.bf16.mxu0 0
  %265 = vmatpush1.bf16.msra.mxu0 0
  %266 = vmatprep.subr.bf16.mxu0 0
  %267 = vmatpush1.bf16.msra.mxu0 0
  %268 = vmatprep.subr.bf16.mxu0 0
  %269 = vmatpush1.bf16.msra.mxu0 0
  %270 = vmatprep.subr.bf16.mxu0 0
  %271 = vmatpush1.bf16.msra.mxu0 %v254
  %272 = vmatprep.subr.bf16.mxu0 0
  %273 = vmatpush1.bf16.msra.mxu0 %v253
  %274 = vmatprep.subr.bf16.mxu0 0
  %275 = vmatpush1.bf16.msra.mxu0 %v252
  %276 = vmatprep.subr.bf16.mxu0 0
  %277 = vmatpush1.bf16.msra.mxu0 %v251
  %278 = vmatprep.subr.bf16.mxu0 0
  %279 = vmatpush2.bf16.msra.mxu0 0
  %280 = vmatprep.subr.bf16.mxu0 0
  %281 = vmatpush2.bf16.msra.mxu0 0
  %282 = vmatprep.subr.bf16.mxu0 0
  %283 = vmatpush2.bf16.msra.mxu0 0
  %284 = vmatprep.subr.bf16.mxu0 0
  %285 = vmatpush2.bf16.msra.mxu0 0
  %286 = vmatprep.subr.bf16.mxu0 0
  %287 = vmatpush2.bf16.msra.mxu0 0
  %288 = vmatprep.subr.bf16.mxu0 0
  %289 = vmatpush2.bf16.msra.mxu0 0
  %290 = vmatprep.subr.bf16.mxu0 0
  %291 = vmatpush2.bf16.msra.mxu0 0
  %292 = vmatprep.subr.bf16.mxu0 0
  %293 = vmatpush2.bf16.msra.mxu0 0
  %294 = vmatprep.mubr.bf16.mxu0 0
  %295 = vmatmul.mubr.bf16.gmra.mxu0 %v260
  %v296 = vpop.f32.mrf.mxu0
  %v297 = vadd.f32 0.0, %v296
  %v298 = vpop.f32.mrf.mxu0
  %v299 = vpop.f32.mrf.mxu0
  %v300 = vpop.f32.mrf.mxu0
  %301 = vdwg.mxu0
  %vm302 = vcmask 519168
  %v303 = vsel %vm302, %v297, 0.0
  %v304 = vrot.slane %v303, 4
  %v305 = vadd.f32 %v303, %v304
  %v306 = vrot.slane %v305, 2
  %v307 = vadd.f32 %v305, %v306
  %v308 = vrot.slane %v307, 1
  %v309 = vadd.f32 %v307, %v308
  %v310 = vrcp.pop 4.0
  %v311 = vmul.f32 %v309, %v310
  %v312 = vsub.f32 %v297, %v311
  %v313 = vmul.f32 %v312, %v312
  %v314 = vsel %vm302, %v313, 0.0
  %v315 = vrot.slane %v314, 4
  %v316 = vadd.f32 %v314, %v315
  %v317 = vrot.slane %v316, 2
  %v318 = vadd.f32 %v316, %v317
  %v319 = vrot.slane %v318, 1
  %v320 = vadd.f32 %v318, %v319
  %v321 = vmul.f32 %v320, %v310
  %v322 = vadd.f32 %v321, 1e-05
  %v323 = vrsqrt.pop %v322
  %v324 = vmul.f32 %v312, %v323
  %vm325 = vcmp.ge.f32.partialorder %v324, 0.0
  %v326 = vmul.f32 %v324, 0.01
  %v327 = vsel %vm325, %v324, %v326
  %v328 = vadd.f32 %v21, %v327
  %329 = vst.msk [vmem:[%s5] sm:$0xf] %vm302, %v328
  // Predicated region
  $region22: #{_lambda_.10} parent=0 // pred_check
    _
  $region23: #{_lambda_.10} parent=0 // pred_check_branch
    %331 = sbr.rel (0) target = $region25
  $region24: #{_lambda_.10} parent=0 // pred_region
    _
  $region25: #{_lambda_.10} parent=0 // pred_fallthru
    _
  // Predicated region
  $region26: #{_lambda_.10} parent=0 // pred_check
    _
  $region27: #{_lambda_.10} parent=0 // pred_check_branch
    %333 = sbr.rel (0) target = $region29
  $region28: #{_lambda_.10} parent=0 // pred_region
    _
  $region29: #{_lambda_.10} parent=0 // pred_fallthru
    _

// kernel: _lambda_.11
$region0: #{_lambda_.11}
  #allocation0 [shape = 'u32[]', space=smem, size = 0x4, offset = 0x4, fixed_abs, tag = 'smem constant byte address 0x4 - core index']
  #allocation1 [shape = 'u32[144,128]{1,0:T(1,128)}', space=vmem, size = 0x12000, scoped, tag = 'internal scratch']
  #allocation2 [shape = 'f32[1,1]{1,0:T(1,128)S(1)}', space=vmem, size = 0x200, scoped, tag = 'scoped memory for _lambda_.11']
  %s0 = inlined_call_operand.vmem [shape: f32[4,64], index: 0, kind: input, shape index: {}]
  %s1 = inlined_call_operand.vmem [shape: bf16[2,4], index: 1, kind: input, shape index: {}]
  %s2 = inlined_call_operand.vmem [shape: bf16[2,4], index: 2, kind: input, shape index: {}]
  %s3 = inlined_call_operand.vmem [shape: bf16[64,128], index: 3, kind: input, shape index: {}]
  %s4 = inlined_call_operand.vmem [shape: bf16[64,128], index: 4, kind: input, shape index: {}]
  %s5 = inlined_call_operand.vmem [shape: bf16[64,64], index: 5, kind: input, shape index: {}]
  %s6 = inlined_call_operand.vmem [shape: bf16[64,16], index: 6, kind: input, shape index: {}]
  %s7 = inlined_call_operand.vmem [shape: f32[1,16], index: 7, kind: input, shape index: {}]
  %s8 = inlined_call_operand.vmem [shape: bf16[16,1], index: 8, kind: input, shape index: {}]
  %s9 = inlined_call_operand.<no memory space> [shape: f32[1,1], index: 9, kind: input, shape index: {}]
  %s10 = inlined_call_operand.vmem [shape: f32[2,1], index: 10, kind: output, shape index: {}]
  %s11 = sld [smem:[#allocation0]]
  $region50: #{_lambda_.11} parent=0
    _
  %s13 = ssub.s32 1, %s11
  %s14 = scalar_select 0, %s13, %s11
  %v15 = vstv %s9
  %16 = vst [vmem:[#allocation2] sm:$0x1] %v15
  // Predicated region
  $region2: #{_lambda_.11} parent=0 // pred_check
    _
  $region3: #{_lambda_.11} parent=0 // pred_check_branch
    %18 = sbr.rel (0) target = $region5
  $region4: #{_lambda_.11} parent=0 // pred_region
    _
  $region5: #{_lambda_.11} parent=0 // pred_fallthru
    _
  // Predicated region
  $region6: #{_lambda_.11} parent=0 // pred_check
    _
  $region7: #{_lambda_.11} parent=0 // pred_check_branch
    %20 = sbr.rel (0) target = $region9
  $region8: #{_lambda_.11} parent=0 // pred_region
    _
  $region9: #{_lambda_.11} parent=0 // pred_fallthru
    _
  // Predicated region
  $region10: #{_lambda_.11} parent=0 // pred_check
    _
  $region11: #{_lambda_.11} parent=0 // pred_check_branch
    %22 = sbr.rel (0) target = $region13
  $region12: #{_lambda_.11} parent=0 // pred_region
    _
  $region13: #{_lambda_.11} parent=0 // pred_fallthru
    _
  // Predicated region
  $region14: #{_lambda_.11} parent=0 // pred_check
    _
  $region15: #{_lambda_.11} parent=0 // pred_check_branch
    %24 = sbr.rel (0) target = $region17
  $region16: #{_lambda_.11} parent=0 // pred_region
    _
  $region17: #{_lambda_.11} parent=0 // pred_fallthru
    _
  // Predicated region
  $region18: #{_lambda_.11} parent=0 // pred_check
    _
  $region19: #{_lambda_.11} parent=0 // pred_check_branch
    %26 = sbr.rel (0) target = $region21
  $region20: #{_lambda_.11} parent=0 // pred_region
    _
  $region21: #{_lambda_.11} parent=0 // pred_fallthru
    _
  // Predicated region
  $region22: #{_lambda_.11} parent=0 // pred_check
    _
  $region23: #{_lambda_.11} parent=0 // pred_check_branch
    %28 = sbr.rel (0) target = $region25
  $region24: #{_lambda_.11} parent=0 // pred_region
    _
  $region25: #{_lambda_.11} parent=0 // pred_fallthru
    _
  // Predicated region
  $region26: #{_lambda_.11} parent=0 // pred_check
    _
  $region27: #{_lambda_.11} parent=0 // pred_check_branch
    %30 = sbr.rel (0) target = $region29
  $region28: #{_lambda_.11} parent=0 // pred_region
    _
  $region29: #{_lambda_.11} parent=0 // pred_fallthru
    _
  // Predicated region
  $region30: #{_lambda_.11} parent=0 // pred_check
    _
  $region31: #{_lambda_.11} parent=0 // pred_check_branch
    %32 = sbr.rel (0) target = $region33
  $region32: #{_lambda_.11} parent=0 // pred_region
    _
  $region33: #{_lambda_.11} parent=0 // pred_fallthru
    _
  // Predicated region
  $region34: #{_lambda_.11} parent=0 // pred_check
    _
  $region35: #{_lambda_.11} parent=0 // pred_check_branch
    %34 = sbr.rel (0) target = $region37
  $region36: #{_lambda_.11} parent=0 // pred_region
    _
  $region37: #{_lambda_.11} parent=0 // pred_fallthru
    _
  // Predicated region
  $region38: #{_lambda_.11} parent=0 // pred_check
    _
  $region39: #{_lambda_.11} parent=0 // pred_check_branch
    %36 = sbr.rel (0) target = $region41
  $region40: #{_lambda_.11} parent=0 // pred_region
    _
  $region41: #{_lambda_.11} parent=0 // pred_fallthru
    _
  %v38 = vld [vmem:[%s0] sm:$0xf]
  %v39 = vld [vmem:[%s1] sm:$0x1]
  %v40 = vpack.c.bf16 %v38, %v38
  %vm41 = vcmask 31744
  %v43 = vsel %vm41, %v39, 0
  %vm45 = vcmask 1041408
  %v47 = vsel %vm45, %v40, 0
  %49 = vmatprep.subr.bf16.mxu0 0
  %50 = vmatpush1.bf16.msra.mxu0 0
  %51 = vmatprep.subr.bf16.mxu0 0
  %52 = vmatpush1.bf16.msra.mxu0 0
  %53 = vmatprep.subr.bf16.mxu0 0
  %54 = vmatpush1.bf16.msra.mxu0 0
  %55 = vmatprep.subr.bf16.mxu0 0
  %56 = vmatpush1.bf16.msra.mxu0 0
  %57 = vmatprep.subr.bf16.mxu0 0
  %58 = vmatpush1.bf16.msra.mxu0 0
  %59 = vmatprep.subr.bf16.mxu0 0
  %60 = vmatpush1.bf16.msra.mxu0 0
  %61 = vmatprep.subr.bf16.mxu0 0
  %62 = vmatpush1.bf16.msra.mxu0 0
  %63 = vmatprep.subr.bf16.mxu0 0
  %64 = vmatpush1.bf16.msra.mxu0 %v47
  %65 = vmatprep.subr.bf16.mxu0 0
  %66 = vmatpush2.bf16.msra.mxu0 0
  %67 = vmatprep.subr.bf16.mxu0 0
  %68 = vmatpush2.bf16.msra.mxu0 0
  %69 = vmatprep.subr.bf16.mxu0 0
  %70 = vmatpush2.bf16.msra.mxu0 0
  %71 = vmatprep.subr.bf16.mxu0 0
  %72 = vmatpush2.bf16.msra.mxu0 0
  %73 = vmatprep.subr.bf16.mxu0 0
  %74 = vmatpush2.bf16.msra.mxu0 0
  %75 = vmatprep.subr.bf16.mxu0 0
  %76 = vmatpush2.bf16.msra.mxu0 0
  %77 = vmatprep.subr.bf16.mxu0 0
  %78 = vmatpush2.bf16.msra.mxu0 0
  %79 = vmatprep.subr.bf16.mxu0 0
  %80 = vmatpush2.bf16.msra.mxu0 0
  %81 = vmatprep.mubr.bf16.mxu0 0
  %82 = vmatmul.mubr.bf16.gmra.mxu0 %v43
  %v83 = vpop.f32.mrf.mxu0
  %v84 = vadd.f32 0.0, %v83
  %v85 = vpop.f32.mrf.mxu0
  %v86 = vpop.f32.mrf.mxu0
  %v87 = vpop.f32.mrf.mxu0
  %88 = vdwg.mxu0
  %v89 = vld [vmem:[%s2] sm:$0x1]
  %v91 = vsel %vm41, %v89, 0
  %93 = vmatprep.subr.bf16.mxu0 0
  %94 = vmatpush1.bf16.msra.mxu0 0
  %95 = vmatprep.subr.bf16.mxu0 0
  %96 = vmatpush1.bf16.msra.mxu0 0
  %97 = vmatprep.subr.bf16.mxu0 0
  %98 = vmatpush1.bf16.msra.mxu0 0
  %99 = vmatprep.subr.bf16.mxu0 0
  %100 = vmatpush1.bf16.msra.mxu0 0
  %101 = vmatprep.subr.bf16.mxu0 0
  %102 = vmatpush1.bf16.msra.mxu0 0
  %103 = vmatprep.subr.bf16.mxu0 0
  %104 = vmatpush1.bf16.msra.mxu0 0
  %105 = vmatprep.subr.bf16.mxu0 0
  %106 = vmatpush1.bf16.msra.mxu0 0
  %107 = vmatprep.subr.bf16.mxu0 0
  %108 = vmatpush1.bf16.msra.mxu0 %v47
  %109 = vmatprep.subr.bf16.mxu0 0
  %110 = vmatpush2.bf16.msra.mxu0 0
  %111 = vmatprep.subr.bf16.mxu0 0
  %112 = vmatpush2.bf16.msra.mxu0 0
  %113 = vmatprep.subr.bf16.mxu0 0
  %114 = vmatpush2.bf16.msra.mxu0 0
  %115 = vmatprep.subr.bf16.mxu0 0
  %116 = vmatpush2.bf16.msra.mxu0 0
  %117 = vmatprep.subr.bf16.mxu0 0
  %118 = vmatpush2.bf16.msra.mxu0 0
  %119 = vmatprep.subr.bf16.mxu0 0
  %120 = vmatpush2.bf16.msra.mxu0 0
  %121 = vmatprep.subr.bf16.mxu0 0
  %122 = vmatpush2.bf16.msra.mxu0 0
  %123 = vmatprep.subr.bf16.mxu0 0
  %124 = vmatpush2.bf16.msra.mxu0 0
  %125 = vmatprep.mubr.bf16.mxu0 0
  %126 = vmatmul.mubr.bf16.gmra.mxu0 %v91
  %v127 = vpop.f32.mrf.mxu0
  %v128 = vadd.f32 0.0, %v127
  %v129 = vpop.f32.mrf.mxu0
  %v130 = vpop.f32.mrf.mxu0
  %v131 = vpop.f32.mrf.mxu0
  %132 = vdwg.mxu0
  %v133 = vld [vmem:[%s3] sm:$0xf]
  %v134 = vld [vmem:[%s3 + $0x4] sm:$0xf]
  %v135 = vld [vmem:[%s3 + $0x8] sm:$0xf]
  %v136 = vld [vmem:[%s3 + $0xc] sm:$0xf]
  %v137 = vld [vmem:[%s3 + $0x10] sm:$0xf]
  %v138 = vld [vmem:[%s3 + $0x14] sm:$0xf]
  %v139 = vld [vmem:[%s3 + $0x18] sm:$0xf]
  %v140 = vld [vmem:[%s3 + $0x1c] sm:$0xf]
  %v141 = vpack.c.bf16 %v84, %v84
  %v142 = vld [vmem:[%s4] sm:$0xf]
  %v143 = vld [vmem:[%s4 + $0x4] sm:$0xf]
  %v144 = vld [vmem:[%s4 + $0x8] sm:$0xf]
  %v145 = vld [vmem:[%s4 + $0xc] sm:$0xf]
  %v146 = vld [vmem:[%s4 + $0x10] sm:$0xf]
  %v147 = vld [vmem:[%s4 + $0x14] sm:$0xf]
  %v148 = vld [vmem:[%s4 + $0x18] sm:$0xf]
  %v149 = vld [vmem:[%s4 + $0x1c] sm:$0xf]
  %v150 = vpack.c.bf16 %v128, %v128
  %v159 = vunpack.c.l.b16 %v142
  %v160 = vunpack.c.l.b16 %v143
  %v161 = vunpack.c.l.b16 %v144
  %v162 = vunpack.c.l.b16 %v145
  %v163 = vunpack.c.l.b16 %v146
  %v164 = vunpack.c.l.b16 %v147
  %v165 = vunpack.c.l.b16 %v148
  %v166 = vunpack.c.l.b16 %v149
  %v167 = vpack.c.b16 %v160, %v159
  %v168 = vpack.c.b16 %v162, %v161
  %v169 = vpack.c.b16 %v164, %v163
  %v170 = vpack.c.b16 %v166, %v165
  %vm175 = vcmask 523264
  %v177 = vsel %vm175, %v150, 0
  %179 = vmatprep.subr.bf16.mxu0 0
  %180 = vmatpush1.bf16.msra.mxu0 0
  %181 = vmatprep.subr.bf16.mxu0 0
  %182 = vmatpush1.bf16.msra.mxu0 0
  %183 = vmatprep.subr.bf16.mxu0 0
  %184 = vmatpush1.bf16.msra.mxu0 0
  %185 = vmatprep.subr.bf16.mxu0 0
  %186 = vmatpush1.bf16.msra.mxu0 0
  %187 = vmatprep.subr.bf16.mxu0 0
  %188 = vmatpush1.bf16.msra.mxu0 %v170
  %189 = vmatprep.subr.bf16.mxu0 0
  %190 = vmatpush1.bf16.msra.mxu0 %v169
  %191 = vmatprep.subr.bf16.mxu0 0
  %192 = vmatpush1.bf16.msra.mxu0 %v168
  %193 = vmatprep.subr.bf16.mxu0 0
  %194 = vmatpush1.bf16.msra.mxu0 %v167
  %195 = vmatprep.subr.bf16.mxu0 0
  %196 = vmatpush2.bf16.msra.mxu0 0
  %197 = vmatprep.subr.bf16.mxu0 0
  %198 = vmatpush2.bf16.msra.mxu0 0
  %199 = vmatprep.subr.bf16.mxu0 0
  %200 = vmatpush2.bf16.msra.mxu0 0
  %201 = vmatprep.subr.bf16.mxu0 0
  %202 = vmatpush2.bf16.msra.mxu0 0
  %203 = vmatprep.subr.bf16.mxu0 0
  %204 = vmatpush2.bf16.msra.mxu0 0
  %205 = vmatprep.subr.bf16.mxu0 0
  %206 = vmatpush2.bf16.msra.mxu0 0
  %207 = vmatprep.subr.bf16.mxu0 0
  %208 = vmatpush2.bf16.msra.mxu0 0
  %209 = vmatprep.subr.bf16.mxu0 0
  %210 = vmatpush2.bf16.msra.mxu0 0
  %211 = vmatprep.mubr.bf16.mxu0 0
  %212 = vmatmul.mubr.bf16.gmra.mxu0 %v177
  %v213 = vpop.f32.mrf.mxu0
  %v214 = vadd.f32 0.0, %v213
  %v215 = vpop.f32.mrf.mxu0
  %v216 = vpop.f32.mrf.mxu0
  %v217 = vpop.f32.mrf.mxu0
  %218 = vdwg.mxu0
  %v227 = vunpack.c.l.b16 %v133
  %v228 = vunpack.c.l.b16 %v134
  %v229 = vunpack.c.l.b16 %v135
  %v230 = vunpack.c.l.b16 %v136
  %v231 = vunpack.c.l.b16 %v137
  %v232 = vunpack.c.l.b16 %v138
  %v233 = vunpack.c.l.b16 %v139
  %v234 = vunpack.c.l.b16 %v140
  %v235 = vpack.c.b16 %v228, %v227
  %v236 = vpack.c.b16 %v230, %v229
  %v237 = vpack.c.b16 %v232, %v231
  %v238 = vpack.c.b16 %v234, %v233
  %v244 = vsel %vm175, %v141, 0
  %246 = vmatprep.subr.bf16.mxu0 0
  %247 = vmatpush1.bf16.msra.mxu0 0
  %248 = vmatprep.subr.bf16.mxu0 0
  %249 = vmatpush1.bf16.msra.mxu0 0
  %250 = vmatprep.subr.bf16.mxu0 0
  %251 = vmatpush1.bf16.msra.mxu0 0
  %252 = vmatprep.subr.bf16.mxu0 0
  %253 = vmatpush1.bf16.msra.mxu0 0
  %254 = vmatprep.subr.bf16.mxu0 0
  %255 = vmatpush1.bf16.msra.mxu0 %v238
  %256 = vmatprep.subr.bf16.mxu0 0
  %257 = vmatpush1.bf16.msra.mxu0 %v237
  %258 = vmatprep.subr.bf16.mxu0 0
  %259 = vmatpush1.bf16.msra.mxu0 %v236
  %260 = vmatprep.subr.bf16.mxu0 0
  %261 = vmatpush1.bf16.msra.mxu0 %v235
  %262 = vmatprep.subr.bf16.mxu0 0
  %263 = vmatpush2.bf16.msra.mxu0 0
  %264 = vmatprep.subr.bf16.mxu0 0
  %265 = vmatpush2.bf16.msra.mxu0 0
  %266 = vmatprep.subr.bf16.mxu0 0
  %267 = vmatpush2.bf16.msra.mxu0 0
  %268 = vmatprep.subr.bf16.mxu0 0
  %269 = vmatpush2.bf16.msra.mxu0 0
  %270 = vmatprep.subr.bf16.mxu0 0
  %271 = vmatpush2.bf16.msra.mxu0 0
  %272 = vmatprep.subr.bf16.mxu0 0
  %273 = vmatpush2.bf16.msra.mxu0 0
  %274 = vmatprep.subr.bf16.mxu0 0
  %275 = vmatpush2.bf16.msra.mxu0 0
  %276 = vmatprep.subr.bf16.mxu0 0
  %277 = vmatpush2.bf16.msra.mxu0 0
  %278 = vmatprep.mubr.bf16.mxu0 0
  %279 = vmatmul.mubr.bf16.gmra.mxu0 %v244
  %v280 = vpop.f32.mrf.mxu0
  %v281 = vadd.f32 %v214, %v280
  %v282 = vpop.f32.mrf.mxu0
  %v283 = vpop.f32.mrf.mxu0
  %v284 = vpop.f32.mrf.mxu0
  %285 = vdwg.mxu0
  %vm286 = vcmp.ge.f32.partialorder %v281, 0.0
  %v287 = vmul.f32 %v281, 0.01
  %v288 = vsel %vm286, %v281, %v287
  %v289 = vld [vmem:[%s5] sm:$0xf]
  %v290 = vld [vmem:[%s5 + $0x4] sm:$0xf]
  %v291 = vld [vmem:[%s5 + $0x8] sm:$0xf]
  %v292 = vld [vmem:[%s5 + $0xc] sm:$0xf]
  %v293 = vld [vmem:[%s5 + $0x10] sm:$0xf]
  %v294 = vld [vmem:[%s5 + $0x14] sm:$0xf]
  %v295 = vld [vmem:[%s5 + $0x18] sm:$0xf]
  %v296 = vld [vmem:[%s5 + $0x1c] sm:$0xf]
  %v297 = vpack.c.bf16 %v288, %v288
  %v306 = vunpack.c.l.b16 %v289
  %v307 = vunpack.c.l.b16 %v290
  %v308 = vunpack.c.l.b16 %v291
  %v309 = vunpack.c.l.b16 %v292
  %v310 = vunpack.c.l.b16 %v293
  %v311 = vunpack.c.l.b16 %v294
  %v312 = vunpack.c.l.b16 %v295
  %v313 = vunpack.c.l.b16 %v296
  %v314 = vpack.c.b16 %v307, %v306
  %v315 = vpack.c.b16 %v309, %v308
  %v316 = vpack.c.b16 %v311, %v310
  %v317 = vpack.c.b16 %v313, %v312
  %v323 = vsel %vm175, %v297, 0
  %325 = vmatprep.subr.bf16.mxu0 0
  %326 = vmatpush1.bf16.msra.mxu0 0
  %327 = vmatprep.subr.bf16.mxu0 0
  %328 = vmatpush1.bf16.msra.mxu0 0
  %329 = vmatprep.subr.bf16.mxu0 0
  %330 = vmatpush1.bf16.msra.mxu0 0
  %331 = vmatprep.subr.bf16.mxu0 0
  %332 = vmatpush1.bf16.msra.mxu0 0
  %333 = vmatprep.subr.bf16.mxu0 0
  %334 = vmatpush1.bf16.msra.mxu0 %v317
  %335 = vmatprep.subr.bf16.mxu0 0
  %336 = vmatpush1.bf16.msra.mxu0 %v316
  %337 = vmatprep.subr.bf16.mxu0 0
  %338 = vmatpush1.bf16.msra.mxu0 %v315
  %339 = vmatprep.subr.bf16.mxu0 0
  %340 = vmatpush1.bf16.msra.mxu0 %v314
  %341 = vmatprep.subr.bf16.mxu0 0
  %342 = vmatpush2.bf16.msra.mxu0 0
  %343 = vmatprep.subr.bf16.mxu0 0
  %344 = vmatpush2.bf16.msra.mxu0 0
  %345 = vmatprep.subr.bf16.mxu0 0
  %346 = vmatpush2.bf16.msra.mxu0 0
  %347 = vmatprep.subr.bf16.mxu0 0
  %348 = vmatpush2.bf16.msra.mxu0 0
  %349 = vmatprep.subr.bf16.mxu0 0
  %350 = vmatpush2.bf16.msra.mxu0 0
  %351 = vmatprep.subr.bf16.mxu0 0
  %352 = vmatpush2.bf16.msra.mxu0 0
  %353 = vmatprep.subr.bf16.mxu0 0
  %354 = vmatpush2.bf16.msra.mxu0 0
  %355 = vmatprep.subr.bf16.mxu0 0
  %356 = vmatpush2.bf16.msra.mxu0 0
  %357 = vmatprep.mubr.bf16.mxu0 0
  %358 = vmatmul.mubr.bf16.gmra.mxu0 %v323
  %v359 = vpop.f32.mrf.mxu0
  %v360 = vadd.f32 0.0, %v359
  %v361 = vpop.f32.mrf.mxu0
  %v362 = vpop.f32.mrf.mxu0
  %v363 = vpop.f32.mrf.mxu0
  %364 = vdwg.mxu0
  %vm365 = vcmp.ge.f32.partialorder %v360, 0.0
  %v366 = vmul.f32 %v360, 0.01
  %v367 = vsel %vm365, %v360, %v366
  %369 = vrot.lane.b32.xlu0 %v367, 64
  %v370 = vpop.permute.xlu0 %369
  %v372 = vadd.f32 %v288, %v370
  %v373 = vld [vmem:[%s6] sm:$0xf]
  %v374 = vld [vmem:[%s6 + $0x4] sm:$0xf]
  %v375 = vld [vmem:[%s6 + $0x8] sm:$0xf]
  %v376 = vld [vmem:[%s6 + $0xc] sm:$0xf]
  %v377 = vld [vmem:[%s6 + $0x10] sm:$0xf]
  %v378 = vld [vmem:[%s6 + $0x14] sm:$0xf]
  %v379 = vld [vmem:[%s6 + $0x18] sm:$0xf]
  %v380 = vld [vmem:[%s6 + $0x1c] sm:$0xf]
  %v381 = vpack.c.bf16 %v372, %v372
  %v382 = vld [vmem:[%s7] sm:$0x1]
  %v384 = vlaneseq
  %v385 = vshrl.u32 %v384, 7
  %v386 = vsub.s32 0, %v385
  %v387 = vrot.slane %v382, %v386
  %390 = vrot.lane.b32.xlu0 %v381, 64
  %v391 = vpop.permute.xlu0 %390
  %v400 = vunpack.c.l.b16 %v373
  %v401 = vunpack.c.l.b16 %v374
  %v402 = vunpack.c.l.b16 %v375
  %v403 = vunpack.c.l.b16 %v376
  %v404 = vunpack.c.l.b16 %v377
  %v405 = vunpack.c.l.b16 %v378
  %v406 = vunpack.c.l.b16 %v379
  %v407 = vunpack.c.l.b16 %v380
  %v408 = vpack.c.b16 %v401, %v400
  %v409 = vpack.c.b16 %v403, %v402
  %v410 = vpack.c.b16 %v405, %v404
  %v411 = vpack.c.b16 %v407, %v406
  %v417 = vsel %vm175, %v391, 0
  %419 = vmatprep.subr.bf16.mxu0 0
  %420 = vmatpush1.bf16.msra.mxu0 0
  %421 = vmatprep.subr.bf16.mxu0 0
  %422 = vmatpush1.bf16.msra.mxu0 0
  %423 = vmatprep.subr.bf16.mxu0 0
  %424 = vmatpush1.bf16.msra.mxu0 0
  %425 = vmatprep.subr.bf16.mxu0 0
  %426 = vmatpush1.bf16.msra.mxu0 0
  %427 = vmatprep.subr.bf16.mxu0 0
  %428 = vmatpush1.bf16.msra.mxu0 %v411
  %429 = vmatprep.subr.bf16.mxu0 0
  %430 = vmatpush1.bf16.msra.mxu0 %v410
  %431 = vmatprep.subr.bf16.mxu0 0
  %432 = vmatpush1.bf16.msra.mxu0 %v409
  %433 = vmatprep.subr.bf16.mxu0 0
  %434 = vmatpush1.bf16.msra.mxu0 %v408
  %435 = vmatprep.subr.bf16.mxu0 0
  %436 = vmatpush2.bf16.msra.mxu0 0
  %437 = vmatprep.subr.bf16.mxu0 0
  %438 = vmatpush2.bf16.msra.mxu0 0
  %439 = vmatprep.subr.bf16.mxu0 0
  %440 = vmatpush2.bf16.msra.mxu0 0
  %441 = vmatprep.subr.bf16.mxu0 0
  %442 = vmatpush2.bf16.msra.mxu0 0
  %443 = vmatprep.subr.bf16.mxu0 0
  %444 = vmatpush2.bf16.msra.mxu0 0
  %445 = vmatprep.subr.bf16.mxu0 0
  %446 = vmatpush2.bf16.msra.mxu0 0
  %447 = vmatprep.subr.bf16.mxu0 0
  %448 = vmatpush2.bf16.msra.mxu0 0
  %449 = vmatprep.subr.bf16.mxu0 0
  %450 = vmatpush2.bf16.msra.mxu0 0
  %451 = vmatprep.mubr.bf16.mxu0 0
  %452 = vmatmul.mubr.bf16.gmra.mxu0 %v417
  %v453 = vpop.f32.mrf.mxu0
  %v454 = vadd.f32 %v387, %v453
  %v455 = vpop.f32.mrf.mxu0
  %v456 = vpop.f32.mrf.mxu0
  %v457 = vpop.f32.mrf.mxu0
  %458 = vdwg.mxu0
  %vm459 = vcmp.ge.f32.partialorder %v454, 0.0
  %v460 = vmul.f32 %v454, 0.01
  %v461 = vsel %vm459, %v454, %v460
  %v462 = vld [vmem:[%s8] sm:$0xf]
  %v463 = vld [vmem:[%s8 + $0x4] sm:$0xf]
  %v464 = vpack.c.bf16 %v461, %v461
  %v465 = vld [vmem:[#allocation2] sm:$0x1]
  %v467 = vlaneseq
  %v468 = vshrl.u32 %v467, 7
  %v469 = vsub.s32 0, %v468
  %v470 = vrot.slane %v465, %v469
  %v474 = vunpack.c.l.b16 %v462
  %v475 = vunpack.c.l.b16 %v463
  %v476 = vpack.c.b16 %v475, %v474
  %vm478 = vcmask 130048
  %v480 = vsel %vm478, %v464, 0
  %482 = vmatprep.subr.bf16.mxu0 0
  %483 = vmatpush1.bf16.msra.mxu0 0
  %484 = vmatprep.subr.bf16.mxu0 0
  %485 = vmatpush1.bf16.msra.mxu0 0
  %486 = vmatprep.subr.bf16.mxu0 0
  %487 = vmatpush1.bf16.msra.mxu0 0
  %488 = vmatprep.subr.bf16.mxu0 0
  %489 = vmatpush1.bf16.msra.mxu0 0
  %490 = vmatprep.subr.bf16.mxu0 0
  %491 = vmatpush1.bf16.msra.mxu0 0
  %492 = vmatprep.subr.bf16.mxu0 0
  %493 = vmatpush1.bf16.msra.mxu0 0
  %494 = vmatprep.subr.bf16.mxu0 0
  %495 = vmatpush1.bf16.msra.mxu0 0
  %496 = vmatprep.subr.bf16.mxu0 0
  %497 = vmatpush1.bf16.msra.mxu0 %v476
  %498 = vmatprep.subr.bf16.mxu0 0
  %499 = vmatpush2.bf16.msra.mxu0 0
  %500 = vmatprep.subr.bf16.mxu0 0
  %501 = vmatpush2.bf16.msra.mxu0 0
  %502 = vmatprep.subr.bf16.mxu0 0
  %503 = vmatpush2.bf16.msra.mxu0 0
  %504 = vmatprep.subr.bf16.mxu0 0
  %505 = vmatpush2.bf16.msra.mxu0 0
  %506 = vmatprep.subr.bf16.mxu0 0
  %507 = vmatpush2.bf16.msra.mxu0 0
  %508 = vmatprep.subr.bf16.mxu0 0
  %509 = vmatpush2.bf16.msra.mxu0 0
  %510 = vmatprep.subr.bf16.mxu0 0
  %511 = vmatpush2.bf16.msra.mxu0 0
  %512 = vmatprep.subr.bf16.mxu0 0
  %513 = vmatpush2.bf16.msra.mxu0 0
  %514 = vmatprep.mubr.bf16.mxu0 0
  %515 = vmatmul.mubr.bf16.gmra.mxu0 %v480
  %v516 = vpop.f32.mrf.mxu0
  %v517 = vadd.f32 %v470, %v516
  %v518 = vpop.f32.mrf.mxu0
  %v519 = vpop.f32.mrf.mxu0
  %v520 = vpop.f32.mrf.mxu0
  %521 = vdwg.mxu0
  %vm522 = vcmask 1024
  %523 = vst.msk [vmem:[%s10] sm:$0x3] %vm522, %v517
  // Predicated region
  $region42: #{_lambda_.11} parent=0 // pred_check
    _
  $region43: #{_lambda_.11} parent=0 // pred_check_branch
    %525 = sbr.rel (0) target = $region45
  $region44: #{_lambda_.11} parent=0 // pred_region
    _
  $region45: #{_lambda_.11} parent=0 // pred_fallthru
    _
  // Predicated region
  $region46: #{_lambda_.11} parent=0 // pred_check
    _
  $region47: #{_lambda_.11} parent=0 // pred_check_branch
    %527 = sbr.rel (0) target = $region49
  $region48: #{_lambda_.11} parent=0 // pred_region
    _
  $region49: #{_lambda_.11} parent=0 // pred_fallthru
    _

</llo_original>
